<compile_context>
chip_gen: v5e
topology: v5e:2x2
jax: 0.10.0
libtpu: 0.0.40
codegen_flags: <defaults>
</compile_context>

<pallas_src>
import functools
import math

import jax
import jax.numpy as jnp
from jax.experimental import pallas as pl
from jax.experimental.pallas import tpu as pltpu


# ----------------------------------------------------------------------------
# Hardware / tiling utilities
# ----------------------------------------------------------------------------
@functools.lru_cache(maxsize=None)
def _vmem_capacity_bytes():
    try:
        return int(pltpu.get_tpu_info().vmem_capacity_bytes)
    except Exception:
        return 64 << 20                      # conservative (v7x per-TC VMEM)


@functools.lru_cache(maxsize=None)
def _vmem_limit_bytes():
    cap = _vmem_capacity_bytes()
    # <=3/4 of physical and >=24 MiB headroom for compiler scratch:
    # v5e/v6e (128 MiB) -> 96 MiB, v7x (64 MiB) -> 40 MiB.
    return int(max(min(cap - (24 << 20), (cap * 3) // 4), 16 << 20))


def _row_tile(dim, target):
    """Row (sublane) tile for the linear kernels.  Partial trailing blocks are
    safe: padded rows produce garbage that is clipped on writeback and is never
    part of any cross-row reduction."""
    return dim if dim <= target else target


def _col_tile(dim, target=512):
    return dim if dim <= target else target


def _contract_tile(dim, target=512):
    """Contraction (K) tile must divide the dim exactly (padded K columns would
    corrupt the accumulation), and should be a multiple of 128."""
    if dim <= target:
        return dim
    for cand in (512, 384, 256, 128):
        if cand <= target and dim % cand == 0:
            return cand
    return dim                              # fall back to full-K residency


def _divisor_tile(dim, target, align=8):
    """Largest tile <= target that divides `dim` exactly.  Attention tiles must
    cover S exactly so padded rows never pollute the softmax / entropy."""
    if dim <= target:
        return dim
    cand = (target // align) * align
    while cand >= align:
        if dim % cand == 0:
            return cand
        cand -= align
    return dim


def _attn_tiles(seq_len):
    """Per-generation attention tile targets (review: 512/512 on 128 MiB
    VMEM parts, 256/256 on the 64 MiB v7x)."""
    if _vmem_capacity_bytes() >= (100 << 20):
        tq_t, tk_t = 512, 512
    else:
        tq_t, tk_t = 256, 256
    return _divisor_tile(seq_len, tq_t), _divisor_tile(seq_len, tk_t)


# ----------------------------------------------------------------------------
# Fused QKV projection:  qkv[j] = x @ Wt[j] + b[j]   (j in {q, k, v})
# K-tiled with an f32 accumulator so large row tiles still fit in VMEM.
# ----------------------------------------------------------------------------
def _qkv_proj_kernel(x_ref, wt_ref, b_ref, o_ref, acc_ref):
    kk = pl.program_id(3)

    @pl.when(kk == 0)
    def _init():
        acc_ref[...] = jnp.zeros_like(acc_ref)

    acc_ref[...] += jnp.dot(x_ref[...], wt_ref[0],
                            preferred_element_type=jnp.float32)

    @pl.when(kk == pl.num_programs(3) - 1)
    def _finalize():
        o_ref[0] = (acc_ref[...] + b_ref[0]).astype(o_ref.dtype)


def fused_qkv_projection(x2d, wt_qkv, b_qkv, out_dtype):
    m, h_in = x2d.shape
    n = wt_qkv.shape[2]
    tm = _row_tile(m, 512)
    tn = _col_tile(n, 512)
    tkk = _contract_tile(h_in, 512)
    grid = (pl.cdiv(m, tm), 3, pl.cdiv(n, tn), h_in // tkk)
    return pl.pallas_call(
        _qkv_proj_kernel,
        out_shape=jax.ShapeDtypeStruct((3, m, n), out_dtype),
        grid=grid,
        in_specs=[
            pl.BlockSpec((tm, tkk), lambda i, j, nn, kk: (i, kk)),
            pl.BlockSpec((1, tkk, tn), lambda i, j, nn, kk: (j, kk, nn)),
            pl.BlockSpec((1, 1, tn), lambda i, j, nn, kk: (j, 0, nn)),
        ],
        out_specs=pl.BlockSpec((1, tm, tn), lambda i, j, nn, kk: (j, i, nn)),
        scratch_shapes=[pltpu.VMEM((tm, tn), jnp.float32)],
        compiler_params=pltpu.CompilerParams(
            dimension_semantics=("parallel", "parallel", "parallel",
                                 "arbitrary"),
            vmem_limit_bytes=_vmem_limit_bytes(),
        ),
    )(x2d, wt_qkv, b_qkv)


# ----------------------------------------------------------------------------
# Output projection with fused input scale:  o = scale * (x @ Wt) + b
# (equivalent to nn.Linear applied to scale * x).  K-tiled like the QKV proj.
# ----------------------------------------------------------------------------
def _out_proj_kernel(scale_ref, x_ref, wt_ref, b_ref, o_ref, acc_ref):
    kk = pl.program_id(2)

    @pl.when(kk == 0)
    def _init():
        acc_ref[...] = jnp.zeros_like(acc_ref)

    acc_ref[...] += jnp.dot(x_ref[...], wt_ref[...],
                            preferred_element_type=jnp.float32)

    @pl.when(kk == pl.num_programs(2) - 1)
    def _finalize():
        o_ref[...] = (acc_ref[...] * scale_ref[0] + b_ref[...]).astype(
            o_ref.dtype)


def output_projection(x2d, wt_o, b_o, scale):
    m, h_in = x2d.shape
    n = wt_o.shape[1]
    tm = _row_tile(m, 512)
    tn = _col_tile(n, 512)
    tkk = _contract_tile(h_in, 512)
    scale_arr = jnp.asarray(scale, jnp.float32).reshape(1)
    return pl.pallas_call(
        _out_proj_kernel,
        out_shape=jax.ShapeDtypeStruct((m, n), jnp.float32),
        grid=(pl.cdiv(m, tm), pl.cdiv(n, tn), h_in // tkk),
        in_specs=[
            pl.BlockSpec(memory_space=pltpu.MemorySpace.SMEM),   # scale
            pl.BlockSpec((tm, tkk), lambda i, nn, kk: (i, kk)),
            pl.BlockSpec((tkk, tn), lambda i, nn, kk: (kk, nn)),
            pl.BlockSpec((1, tn), lambda i, nn, kk: (0, nn)),
        ],
        out_specs=pl.BlockSpec((tm, tn), lambda i, nn, kk: (i, nn)),
        scratch_shapes=[pltpu.VMEM((tm, tn), jnp.float32)],
        compiler_params=pltpu.CompilerParams(
            dimension_semantics=("parallel", "parallel", "arbitrary"),
            vmem_limit_bytes=_vmem_limit_bytes(),
        ),
    )(scale_arr, x2d, wt_o, b_o)


# ----------------------------------------------------------------------------
# Flash-style attention + entropy (per batch, q-tile; kv axis is a reduction).
# Heads are packed along the lane dimension of each (tile, H) block.
# ----------------------------------------------------------------------------
def _flash_attn_kernel(q_ref, k_ref, v_ref, o_ref, ent_ref,
                       m_sc, l_sc, ps_sc, acc_sc, *, num_heads, head_dim):
    ki = pl.program_id(2)
    kt = pl.num_programs(2)

    @pl.when(ki == 0)
    def _init():
        m_sc[...] = jnp.full(m_sc.shape, -jnp.inf, dtype=m_sc.dtype)
        l_sc[...] = jnp.zeros(l_sc.shape, dtype=l_sc.dtype)
        ps_sc[...] = jnp.zeros(ps_sc.shape, dtype=ps_sc.dtype)
        acc_sc[...] = jnp.zeros(acc_sc.shape, dtype=acc_sc.dtype)

    q = q_ref[0, 0]        # (tq, H)  -- prime_scale already folded into W_q
    k = k_ref[0, 0]        # (tk, H)
    v = v_ref[0, 0]        # (tk, H)
    tq = q.shape[0]

    # Single full-width loads of the running statistics / accumulator.
    m_prev = m_sc[...]     # (tq, NH)
    l_prev = l_sc[...]     # (tq, NH)
    ps_prev = ps_sc[...]   # (tq, NH)
    acc_prev = acc_sc[...]  # (tq, H)

    m_cols, l_cols, ps_cols = [], [], []
    alpha_cols, pv_cols = [], []
    for h in range(num_heads):                      # NH small; per-head
        cols = slice(h * head_dim, (h + 1) * head_dim)   # temporaries die here
        qh = q[:, cols]
        kh = k[:, cols]
        vh = v[:, cols]

        # scores[s, t] = sum_d qh[s, d] * kh[t, d]   (MXU, f32 accumulation)
        s = jax.lax.dot_general(qh, kh, (((1,), (1,)), ((), ())),
                                preferred_element_type=jnp.float32)  # (tq, tk)

        m_h_prev = m_prev[:, h:h + 1]                                # (tq, 1)
        m_h = jnp.maximum(m_h_prev, jnp.max(s, axis=-1, keepdims=True))
        a_h = jnp.exp(m_h_prev - m_h)
        p = jnp.exp(s - m_h)                                         # (tq, tk)

        m_cols.append(m_h)
        l_cols.append(a_h * l_prev[:, h:h + 1]
                      + jnp.sum(p, axis=-1, keepdims=True))
        # running sum of (unnormalized prob * score) for lse-based entropy
        ps_cols.append(a_h * ps_prev[:, h:h + 1]
                       + jnp.sum(p * s, axis=-1, keepdims=True))
        pv_cols.append(jnp.dot(p.astype(vh.dtype), vh,
                               preferred_element_type=jnp.float32))  # (tq, HD)
        alpha_cols.append(jnp.broadcast_to(a_h, (tq, head_dim)))

    # One full-width store per statistic / accumulator per kv step.
    m_sc[...] = jnp.concatenate(m_cols, axis=-1)
    l_sc[...] = jnp.concatenate(l_cols, axis=-1)
    ps_sc[...] = jnp.concatenate(ps_cols, axis=-1)
    alpha_full = jnp.concatenate(alpha_cols, axis=-1)                # (tq, H)
    pv_full = jnp.concatenate(pv_cols, axis=-1)                      # (tq, H)
    acc_sc[...] = alpha_full * acc_prev + pv_full

    @pl.when(ki == kt - 1)
    def _finalize():
        l = l_sc[...]                                                # (tq, NH)
        inv_l = 1.0 / l        # exact: entropy drives a discrete branch
        # row entropy = -sum_k p log p = m + log(l) - (sum_k e_k * s_k) / l
        # (differs from the torch log(attn + 1e-6) version by O(1e-6) only).
        ent = m_sc[...] + jnp.log(l) - ps_sc[...] * inv_l            # (tq, NH)
        ent_ref[...] = jnp.full(ent_ref.shape, jnp.sum(ent), dtype=jnp.float32)

        inv_full = jnp.concatenate(
            [jnp.broadcast_to(inv_l[:, h:h + 1], (tq, head_dim))
             for h in range(num_heads)], axis=-1)                    # (tq, H)
        o_ref[0] = (acc_sc[...] * inv_full).astype(o_ref.dtype)


def flash_attention_entropy(qkv4, *, num_heads):
    """qkv4: (3, B, S, H).  Returns (out (B,S,H), entropy partial sums)."""
    _, b, s, h = qkv4.shape
    hd = h // num_heads
    tq, tk = _attn_tiles(s)
    qt = s // tq
    kt = s // tk
    kernel = functools.partial(_flash_attn_kernel,
                               num_heads=num_heads, head_dim=hd)
    out, ent = pl.pallas_call(
        kernel,
        out_shape=(
            jax.ShapeDtypeStruct((b, s, h), qkv4.dtype),
            # lane-dense (8, 128) tile per (batch, q-tile) holding the entropy
            # partial sum (replicated), instead of a 1-lane masked store.
            jax.ShapeDtypeStruct((b, qt, 8, 128), jnp.float32),
        ),
        grid=(b, qt, kt),
        in_specs=[
            pl.BlockSpec((1, 1, tq, h), lambda bi, qi, ki: (0, bi, qi, 0)),
            pl.BlockSpec((1, 1, tk, h), lambda bi, qi, ki: (1, bi, ki, 0)),
            pl.BlockSpec((1, 1, tk, h), lambda bi, qi, ki: (2, bi, ki, 0)),
        ],
        out_specs=(
            pl.BlockSpec((1, tq, h), lambda bi, qi, ki: (bi, qi, 0)),
            pl.BlockSpec((1, 1, 8, 128), lambda bi, qi, ki: (bi, qi, 0, 0)),
        ),
        scratch_shapes=[
            pltpu.VMEM((tq, num_heads), jnp.float32),   # running max m
            pltpu.VMEM((tq, num_heads), jnp.float32),   # running sum l
            pltpu.VMEM((tq, num_heads), jnp.float32),   # running sum of p*s
            pltpu.VMEM((tq, h), jnp.float32),           # output accumulator
        ],
        compiler_params=pltpu.CompilerParams(
            dimension_semantics=("parallel", "parallel", "arbitrary"),
            vmem_limit_bytes=_vmem_limit_bytes(),
        ),
    )(qkv4, qkv4, qkv4)
    return out, ent


# ----------------------------------------------------------------------------
# Parameter init (deterministic, synthetic — mirrors module __init__ shapes).
# ----------------------------------------------------------------------------
def init_params(key, hidden_dim, num_heads, prime):
    names = ["q", "k", "v", "o", "resonance_gate", "resonance_proj"]
    keys = jax.random.split(key, 2 * len(names))
    params = {}
    for i, n in enumerate(names):
        params[n + "_w"] = 0.02 * jax.random.normal(
            keys[2 * i], (hidden_dim, hidden_dim), jnp.float32)
        params[n + "_b"] = 0.02 * jax.random.normal(
            keys[2 * i + 1], (hidden_dim,), jnp.float32)
    head_dim = hidden_dim // num_heads
    h_idx = jnp.arange(num_heads, dtype=jnp.float32)[:, None]
    d_idx = jnp.arange(head_dim, dtype=jnp.float32)[None, :]
    angle = 2.0 * math.pi * (jnp.mod((h_idx + 1) * (d_idx + 1), prime)) / prime
    params["resonance_base"] = 0.5 + 0.5 * jnp.sin(angle)
    return params


def prepare_params(params, *, num_heads, prime, compute_dtype=jnp.bfloat16):
    """One-time weight prep: transpose, stack QKV, fold prime_scale into W_q."""
    h = params["q_w"].shape[0]
    hd = h // num_heads
    prime_scale = 1.0 / math.sqrt(prime * hd)
    wq = params["q_w"].astype(jnp.float32) * prime_scale
    bq = params["q_b"].astype(jnp.float32) * prime_scale
    wt_qkv = jnp.stack(
        [wq.T,
         params["k_w"].astype(jnp.float32).T,
         params["v_w"].astype(jnp.float32).T], axis=0).astype(compute_dtype)
    b_qkv = jnp.stack(
        [bq,
         params["k_b"].astype(jnp.float32),
         params["v_b"].astype(jnp.float32)], axis=0).reshape(3, 1, h)
    wt_o = params["o_w"].astype(jnp.float32).T.astype(compute_dtype)
    b_o = params["o_b"].astype(jnp.float32).reshape(1, h)
    return {"wt_qkv": wt_qkv, "b_qkv": b_qkv, "wt_o": wt_o, "b_o": b_o}


# ----------------------------------------------------------------------------
# Full forward pass.
# ----------------------------------------------------------------------------
def resonance_attention_forward(prepped, hidden_states, *, num_heads,
                                max_iterations=10, entropy_threshold=0.2):
    b, s, h = hidden_states.shape
    cdt = prepped["wt_qkv"].dtype
    x2d = hidden_states.reshape(b * s, h).astype(cdt)

    qkv = fused_qkv_projection(x2d, prepped["wt_qkv"], prepped["b_qkv"], cdt)
    qkv = qkv.reshape(3, b, s, h)                       # metadata-only reshape

    attn_out, ent_parts = flash_attention_entropy(qkv, num_heads=num_heads)
    avg_entropy = jnp.sum(ent_parts[:, :, 0, 0]) / (b * num_heads * s)

    # The PyTorch refinement loop re-checks an entropy that never changes
    # (attention weights are fixed inside the loop), so it either breaks before
    # any refinement or runs all max_iterations-1 blends.  Each blend scales the
    # attention output by a data-independent scalar, so the loop collapses
    # exactly to attn_out * c_full.
    c_full = 1.0
    for i in range(1, max_iterations):
        blend = 1.0 / (1.0 + math.exp(-i / max_iterations))   # sigmoid(i/N)
        resonance_scale = 0.5 + 0.5 * blend
        c_full = (1.0 - blend) * c_full + blend * resonance_scale
    out_scale = jnp.where(avg_entropy < entropy_threshold,
                          jnp.float32(1.0), jnp.float32(c_full))

    # Fold the blend scalar into the o_proj kernel: o_proj(attn_out * scale).
    out = output_projection(attn_out.reshape(b * s, h),
                            prepped["wt_o"], prepped["b_o"], out_scale)
    return out.reshape(b, s, h)


# ----------------------------------------------------------------------------
# Pure-JAX reference mirroring the PyTorch forward (for validation).
# ----------------------------------------------------------------------------
def reference_forward(params, x, *, num_heads, prime, max_iterations,
                      entropy_threshold):
    b, s, h = x.shape
    hd = h // num_heads

    def lin(t, w, bias):
        return t @ w.T + bias

    def split(t):
        return t.reshape(b, s, num_heads, hd).transpose(0, 2, 1, 3)

    q = split(lin(x, params["q_w"], params["q_b"]))
    k = split(lin(x, params["k_w"], params["k_b"]))
    v = split(lin(x, params["v_w"], params["v_b"]))
    q = q * (1.0 / math.sqrt(prime * hd))
    scores = jnp.einsum("bhqd,bhkd->bhqk", q, k)
    attn = jax.nn.softmax(scores, axis=-1)
    current = jnp.einsum("bhqk,bhkd->bhqd", attn, v)
    entropy = -jnp.sum(attn * jnp.log(attn + 1e-6), axis=-1).mean(axis=-1)
    avg_entropy = float(jnp.mean(entropy))
    if avg_entropy >= entropy_threshold:
        for i in range(1, max_iterations):
            blend = 1.0 / (1.0 + math.exp(-i / max_iterations))
            resonance_scale = 0.5 + 0.5 * blend
            refined = jnp.einsum("bhqk,bhkd->bhqd", attn, v * resonance_scale)
            current = (1.0 - blend) * current + blend * refined
    merged = current.transpose(0, 2, 1, 3).reshape(b, s, h)
    return lin(merged, params["o_w"], params["o_b"])


if __name__ == "__main__":
    B, S, H, NH = 2, 8, 32, 4
    PRIME, MAX_ITERS, ENT_THRESH = 7, 10, 0.2

    key = jax.random.PRNGKey(0)
    k_params, k_x = jax.random.split(key)
    params = init_params(k_params, H, NH, PRIME)
    x = jax.random.normal(k_x, (B, S, H), jnp.float32)

    ref = reference_forward(params, x, num_heads=NH, prime=PRIME,
                            max_iterations=MAX_ITERS,
                            entropy_threshold=ENT_THRESH)

    fwd = jax.jit(resonance_attention_forward,
                  static_argnames=("num_heads", "max_iterations",
                                   "entropy_threshold"))

    # f32 compute path: tight check against the pure-JAX reference.
    prep_f32 = prepare_params(params, num_heads=NH, prime=PRIME,
                              compute_dtype=jnp.float32)
    out = jax.block_until_ready(
        fwd(prep_f32, x, num_heads=NH, max_iterations=MAX_ITERS,
            entropy_threshold=ENT_THRESH))
    assert out.shape == (B, S, H)
    err = float(jnp.max(jnp.abs(out - ref)))
    assert err < 2e-4, f"f32 mismatch vs reference, max abs err = {err}"

    # bf16 MXU-operand path (f32 accumulation everywhere): loose check.
    prep_bf16 = prepare_params(params, num_heads=NH, prime=PRIME,
                               compute_dtype=jnp.bfloat16)
    out_bf16 = jax.block_until_ready(
        fwd(prep_bf16, x, num_heads=NH, max_iterations=MAX_ITERS,
            entropy_threshold=ENT_THRESH))
    err_bf16 = float(jnp.max(jnp.abs(out_bf16 - ref)))
    assert err_bf16 < 2e-2, f"bf16 mismatch vs reference, max abs err = {err_bf16}"

    print("KERNEL_OK")
</pallas_src>

<mosaic_0001>
module attributes {stable_mosaic.version = 11 : i64} {
  func.func @_qkv_proj_kernel(%arg0: i32, %arg1: i32, %arg2: i32, %arg3: i32, %arg4: memref<16x32xf32, #tpu.memory_space<vmem>>, %arg5: memref<1x32x32xf32, #tpu.memory_space<vmem>>, %arg6: memref<1x1x32xf32, #tpu.memory_space<vmem>>, %arg7: memref<1x16x32xf32, #tpu.memory_space<vmem>>, %arg8: memref<16x32xf32, #tpu.memory_space<vmem>>) attributes {dimension_semantics = [#tpu.dimension_semantics<parallel>, #tpu.dimension_semantics<parallel>, #tpu.dimension_semantics<parallel>, #tpu.dimension_semantics<arbitrary>], iteration_bounds = array<i64: 1, 3, 1, 1>, scalar_prefetch = 0 : i64, scratch_operands = 1 : i64, tpu.core_type = #tpu.core_type<tc>, window_params = [{transform_indices = @transform_0, window_bounds = array<i64: 16, 32>}, {transform_indices = @transform_1, window_bounds = array<i64: 1, 32, 32>}, {transform_indices = @transform_2, window_bounds = array<i64: 1, 1, 32>}, {transform_indices = @transform_3, window_bounds = array<i64: 1, 16, 32>}]} {
    %c0_i32 = arith.constant 0 : i32
    %0 = arith.cmpi eq, %arg3, %c0_i32 : i32
    %1 = arith.extui %0 : i1 to i32
    %c0_i32_0 = arith.constant 0 : i32
    %2 = arith.cmpi ne, %1, %c0_i32_0 : i32
    scf.if %2 {
      %cst_11 = arith.constant 0.000000e+00 : f32
      %13 = vector.broadcast %cst_11 : f32 to vector<16x32xf32>
      %c0_12 = arith.constant 0 : index
      %c0_13 = arith.constant 0 : index
      %14 = vector.load %arg8[%c0_12, %c0_13] : memref<16x32xf32, #tpu.memory_space<vmem>>, vector<16x32xf32>
      tpu.vector_store %arg8[%c0_12, %c0_13], %13 {strides = array<i32>} : memref<16x32xf32, #tpu.memory_space<vmem>>, vector<16x32xf32>,
    } else {
    }
    %c0 = arith.constant 0 : index
    %c0_1 = arith.constant 0 : index
    %3 = vector.load %arg8[%c0, %c0_1] : memref<16x32xf32, #tpu.memory_space<vmem>>, vector<16x32xf32>
    %c0_2 = arith.constant 0 : index
    %c0_3 = arith.constant 0 : index
    %4 = vector.load %arg4[%c0_2, %c0_3] : memref<16x32xf32, #tpu.memory_space<vmem>>, vector<16x32xf32>
    %c0_4 = arith.constant 0 : index
    %c0_5 = arith.constant 0 : index
    %c0_6 = arith.constant 0 : index
    %5 = vector.load %arg5[%c0_4, %c0_5, %c0_6] : memref<1x32x32xf32, #tpu.memory_space<vmem>>, vector<1x32x32xf32>
    %6 = vector.shape_cast %5 : vector<1x32x32xf32> to vector<32x32xf32>
    %cst = arith.constant dense<0.000000e+00> : vector<16x32xf32>
    %7 = tpu.matmul %4, %6, %cst {dimension_numbers = #tpu.dot_dimension_numbers<[1], [0], [0], [1], [0, 0, 1, 1], [], []>} : vector<16x32xf32>, vector<32x32xf32>, vector<16x32xf32> -> vector<16x32xf32>
    %8 = arith.addf %3, %7 : vector<16x32xf32>
    %c0_7 = arith.constant 0 : index
    %c0_8 = arith.constant 0 : index
    %9 = vector.load %arg8[%c0_7, %c0_8] : memref<16x32xf32, #tpu.memory_space<vmem>>, vector<16x32xf32>
    tpu.vector_store %arg8[%c0_7, %c0_8], %8 {strides = array<i32>} : memref<16x32xf32, #tpu.memory_space<vmem>>, vector<16x32xf32>,
    %c0_i32_9 = arith.constant 0 : i32
    %10 = arith.cmpi eq, %arg3, %c0_i32_9 : i32
    %11 = arith.extui %10 : i1 to i32
    %c0_i32_10 = arith.constant 0 : i32
    %12 = arith.cmpi ne, %11, %c0_i32_10 : i32
    scf.if %12 {
      %c0_11 = arith.constant 0 : index
      %c0_12 = arith.constant 0 : index
      %13 = vector.load %arg8[%c0_11, %c0_12] : memref<16x32xf32, #tpu.memory_space<vmem>>, vector<16x32xf32>
      %c0_13 = arith.constant 0 : index
      %c0_14 = arith.constant 0 : index
      %c0_15 = arith.constant 0 : index
      %14 = vector.load %arg6[%c0_13, %c0_14, %c0_15] : memref<1x1x32xf32, #tpu.memory_space<vmem>>, vector<1x1x32xf32>
      %15 = vector.shape_cast %14 : vector<1x1x32xf32> to vector<1x32xf32>
      %16 = vector.broadcast %15 : vector<1x32xf32> to vector<16x32xf32>
      %17 = arith.addf %13, %16 : vector<16x32xf32>
      %c0_16 = arith.constant 0 : index
      %c0_17 = arith.constant 0 : index
      %c0_18 = arith.constant 0 : index
      %18 = vector.load %arg7[%c0_16, %c0_17, %c0_18] : memref<1x16x32xf32, #tpu.memory_space<vmem>>, vector<1x16x32xf32>
      %19 = vector.shape_cast %18 : vector<1x16x32xf32> to vector<16x32xf32>
      %20 = vector.shape_cast %17 : vector<16x32xf32> to vector<1x16x32xf32>
      tpu.vector_store %arg7[%c0_16, %c0_17, %c0_18], %20 {strides = array<i32>} : memref<1x16x32xf32, #tpu.memory_space<vmem>>, vector<1x16x32xf32>,
    } else {
    }
    return
  }
  func.func @transform_0(%arg0: i32, %arg1: i32, %arg2: i32, %arg3: i32) -> (i32, i32) {
    %c0_i32 = arith.constant 0 : i32
    return %arg0, %arg3 : i32, i32
  }
  func.func @transform_1(%arg0: i32, %arg1: i32, %arg2: i32, %arg3: i32) -> (i32, i32, i32) {
    %c0_i32 = arith.constant 0 : i32
    return %arg1, %arg3, %arg2 : i32, i32, i32
  }
  func.func @transform_2(%arg0: i32, %arg1: i32, %arg2: i32, %arg3: i32) -> (i32, i32, i32) {
    %c0_i32 = arith.constant 0 : i32
    %c0_i32_0 = arith.constant 0 : i32
    return %arg1, %c0_i32, %arg2 : i32, i32, i32
  }
  func.func @transform_3(%arg0: i32, %arg1: i32, %arg2: i32, %arg3: i32) -> (i32, i32, i32) {
    %c0_i32 = arith.constant 0 : i32
    return %arg1, %arg0, %arg2 : i32, i32, i32
  }
}

module attributes {stable_mosaic.version = 11 : i64} {
  func.func @_out_proj_kernel(%arg0: i32, %arg1: i32, %arg2: i32, %arg3: memref<1xf32, #tpu.memory_space<smem>>, %arg4: memref<16x32xf32, #tpu.memory_space<vmem>>, %arg5: memref<32x32xf32, #tpu.memory_space<vmem>>, %arg6: memref<1x32xf32, #tpu.memory_space<vmem>>, %arg7: memref<16x32xf32, #tpu.memory_space<vmem>>, %arg8: memref<16x32xf32, #tpu.memory_space<vmem>>) attributes {dimension_semantics = [#tpu.dimension_semantics<parallel>, #tpu.dimension_semantics<parallel>, #tpu.dimension_semantics<arbitrary>], iteration_bounds = array<i64: 1, 1, 1>, scalar_prefetch = 0 : i64, scratch_operands = 1 : i64, tpu.core_type = #tpu.core_type<tc>, window_params = [{transform_indices = @transform_0, window_bounds = array<i64: 1>}, {transform_indices = @transform_1, window_bounds = array<i64: 16, 32>}, {transform_indices = @transform_2, window_bounds = array<i64: 32, 32>}, {transform_indices = @transform_3, window_bounds = array<i64: 1, 32>}, {transform_indices = @transform_4, window_bounds = array<i64: 16, 32>}]} {
    %c0_i32 = arith.constant 0 : i32
    %0 = arith.cmpi eq, %arg2, %c0_i32 : i32
    %1 = arith.extui %0 : i1 to i32
    %c0_i32_0 = arith.constant 0 : i32
    %2 = arith.cmpi ne, %1, %c0_i32_0 : i32
    scf.if %2 {
      %cst_10 = arith.constant 0.000000e+00 : f32
      %12 = vector.broadcast %cst_10 : f32 to vector<16x32xf32>
      %c0_11 = arith.constant 0 : index
      %c0_12 = arith.constant 0 : index
      %13 = vector.load %arg8[%c0_11, %c0_12] : memref<16x32xf32, #tpu.memory_space<vmem>>, vector<16x32xf32>
      tpu.vector_store %arg8[%c0_11, %c0_12], %12 {strides = array<i32>} : memref<16x32xf32, #tpu.memory_space<vmem>>, vector<16x32xf32>,
    } else {
    }
    %c0 = arith.constant 0 : index
    %c0_1 = arith.constant 0 : index
    %3 = vector.load %arg8[%c0, %c0_1] : memref<16x32xf32, #tpu.memory_space<vmem>>, vector<16x32xf32>
    %c0_2 = arith.constant 0 : index
    %c0_3 = arith.constant 0 : index
    %4 = vector.load %arg4[%c0_2, %c0_3] : memref<16x32xf32, #tpu.memory_space<vmem>>, vector<16x32xf32>
    %c0_4 = arith.constant 0 : index
    %c0_5 = arith.constant 0 : index
    %5 = vector.load %arg5[%c0_4, %c0_5] : memref<32x32xf32, #tpu.memory_space<vmem>>, vector<32x32xf32>
    %cst = arith.constant dense<0.000000e+00> : vector<16x32xf32>
    %6 = tpu.matmul %4, %5, %cst {dimension_numbers = #tpu.dot_dimension_numbers<[1], [0], [0], [1], [0, 0, 1, 1], [], []>} : vector<16x32xf32>, vector<32x32xf32>, vector<16x32xf32> -> vector<16x32xf32>
    %7 = arith.addf %3, %6 : vector<16x32xf32>
    %c0_6 = arith.constant 0 : index
    %c0_7 = arith.constant 0 : index
    %8 = vector.load %arg8[%c0_6, %c0_7] : memref<16x32xf32, #tpu.memory_space<vmem>>, vector<16x32xf32>
    tpu.vector_store %arg8[%c0_6, %c0_7], %7 {strides = array<i32>} : memref<16x32xf32, #tpu.memory_space<vmem>>, vector<16x32xf32>,
    %c0_i32_8 = arith.constant 0 : i32
    %9 = arith.cmpi eq, %arg2, %c0_i32_8 : i32
    %10 = arith.extui %9 : i1 to i32
    %c0_i32_9 = arith.constant 0 : i32
    %11 = arith.cmpi ne, %10, %c0_i32_9 : i32
    scf.if %11 {
      %c0_10 = arith.constant 0 : index
      %c0_11 = arith.constant 0 : index
      %12 = vector.load %arg8[%c0_10, %c0_11] : memref<16x32xf32, #tpu.memory_space<vmem>>, vector<16x32xf32>
      %c0_12 = arith.constant 0 : index
      %13 = memref.load %arg3[%c0_12] : memref<1xf32, #tpu.memory_space<smem>>
      %14 = vector.broadcast %13 : f32 to vector<16x32xf32>
      %15 = arith.mulf %12, %14 : vector<16x32xf32>
      %c0_13 = arith.constant 0 : index
      %c0_14 = arith.constant 0 : index
      %16 = vector.load %arg6[%c0_13, %c0_14] : memref<1x32xf32, #tpu.memory_space<vmem>>, vector<1x32xf32>
      %17 = vector.broadcast %16 : vector<1x32xf32> to vector<16x32xf32>
      %18 = arith.addf %15, %17 : vector<16x32xf32>
      %c0_15 = arith.constant 0 : index
      %c0_16 = arith.constant 0 : index
      %19 = vector.load %arg7[%c0_15, %c0_16] : memref<16x32xf32, #tpu.memory_space<vmem>>, vector<16x32xf32>
      tpu.vector_store %arg7[%c0_15, %c0_16], %18 {strides = array<i32>} : memref<16x32xf32, #tpu.memory_space<vmem>>, vector<16x32xf32>,
    } else {
    }
    return
  }
  func.func @transform_0(%arg0: i32, %arg1: i32, %arg2: i32) -> i32 {
    %c0_i32 = arith.constant 0 : i32
    %c0_i32_0 = arith.constant 0 : i32
    return %c0_i32 : i32
  }
  func.func @transform_1(%arg0: i32, %arg1: i32, %arg2: i32) -> (i32, i32) {
    %c0_i32 = arith.constant 0 : i32
    return %arg0, %arg2 : i32, i32
  }
  func.func @transform_2(%arg0: i32, %arg1: i32, %arg2: i32) -> (i32, i32) {
    %c0_i32 = arith.constant 0 : i32
    return %arg2, %arg1 : i32, i32
  }
  func.func @transform_3(%arg0: i32, %arg1: i32, %arg2: i32) -> (i32, i32) {
    %c0_i32 = arith.constant 0 : i32
    %c0_i32_0 = arith.constant 0 : i32
    return %c0_i32, %arg1 : i32, i32
  }
  func.func @transform_4(%arg0: i32, %arg1: i32, %arg2: i32) -> (i32, i32) {
    %c0_i32 = arith.constant 0 : i32
    return %arg0, %arg1 : i32, i32
  }
}

module attributes {stable_mosaic.version = 11 : i64} {
  func.func @_flash_attn_kernel(%arg0: i32, %arg1: i32, %arg2: i32, %arg3: memref<1x1x8x32xf32, #tpu.memory_space<vmem>>, %arg4: memref<1x1x8x32xf32, #tpu.memory_space<vmem>>, %arg5: memref<1x1x8x32xf32, #tpu.memory_space<vmem>>, %arg6: memref<1x8x32xf32, #tpu.memory_space<vmem>>, %arg7: memref<1x1x8x128xf32, #tpu.memory_space<vmem>>, %arg8: memref<8x4xf32, #tpu.memory_space<vmem>>, %arg9: memref<8x4xf32, #tpu.memory_space<vmem>>, %arg10: memref<8x4xf32, #tpu.memory_space<vmem>>, %arg11: memref<8x32xf32, #tpu.memory_space<vmem>>) attributes {dimension_semantics = [#tpu.dimension_semantics<parallel>, #tpu.dimension_semantics<parallel>, #tpu.dimension_semantics<arbitrary>], iteration_bounds = array<i64: 2, 1, 1>, scalar_prefetch = 0 : i64, scratch_operands = 4 : i64, tpu.core_type = #tpu.core_type<tc>, window_params = [{transform_indices = @transform_0, window_bounds = array<i64: 1, 1, 8, 32>}, {transform_indices = @transform_1, window_bounds = array<i64: 1, 1, 8, 32>}, {transform_indices = @transform_2, window_bounds = array<i64: 1, 1, 8, 32>}, {transform_indices = @transform_3, window_bounds = array<i64: 1, 8, 32>}, {transform_indices = @transform_4, window_bounds = array<i64: 1, 1, 8, 128>}]} {
    %c0_i32 = arith.constant 0 : i32
    %0 = arith.cmpi eq, %arg2, %c0_i32 : i32
    %1 = arith.extui %0 : i1 to i32
    %c0_i32_0 = arith.constant 0 : i32
    %2 = arith.cmpi ne, %1, %c0_i32_0 : i32
    scf.if %2 {
      %cst_49 = arith.constant 0xFF800000 : f32
      %135 = vector.broadcast %cst_49 : f32 to vector<8x4xf32>
      %c0_50 = arith.constant 0 : index
      %c0_51 = arith.constant 0 : index
      %136 = vector.load %arg8[%c0_50, %c0_51] : memref<8x4xf32, #tpu.memory_space<vmem>>, vector<8x4xf32>
      tpu.vector_store %arg8[%c0_50, %c0_51], %135 {strides = array<i32>} : memref<8x4xf32, #tpu.memory_space<vmem>>, vector<8x4xf32>,
      %cst_52 = arith.constant 0.000000e+00 : f32
      %137 = vector.broadcast %cst_52 : f32 to vector<8x4xf32>
      %c0_53 = arith.constant 0 : index
      %c0_54 = arith.constant 0 : index
      %138 = vector.load %arg9[%c0_53, %c0_54] : memref<8x4xf32, #tpu.memory_space<vmem>>, vector<8x4xf32>
      tpu.vector_store %arg9[%c0_53, %c0_54], %137 {strides = array<i32>} : memref<8x4xf32, #tpu.memory_space<vmem>>, vector<8x4xf32>,
      %cst_55 = arith.constant 0.000000e+00 : f32
      %139 = vector.broadcast %cst_55 : f32 to vector<8x4xf32>
      %c0_56 = arith.constant 0 : index
      %c0_57 = arith.constant 0 : index
      %140 = vector.load %arg10[%c0_56, %c0_57] : memref<8x4xf32, #tpu.memory_space<vmem>>, vector<8x4xf32>
      tpu.vector_store %arg10[%c0_56, %c0_57], %139 {strides = array<i32>} : memref<8x4xf32, #tpu.memory_space<vmem>>, vector<8x4xf32>,
      %cst_58 = arith.constant 0.000000e+00 : f32
      %141 = vector.broadcast %cst_58 : f32 to vector<8x32xf32>
      %c0_59 = arith.constant 0 : index
      %c0_60 = arith.constant 0 : index
      %142 = vector.load %arg11[%c0_59, %c0_60] : memref<8x32xf32, #tpu.memory_space<vmem>>, vector<8x32xf32>
      tpu.vector_store %arg11[%c0_59, %c0_60], %141 {strides = array<i32>} : memref<8x32xf32, #tpu.memory_space<vmem>>, vector<8x32xf32>,
    } else {
    }
    %c0 = arith.constant 0 : index
    %c0_1 = arith.constant 0 : index
    %c0_2 = arith.constant 0 : index
    %c0_3 = arith.constant 0 : index
    %3 = vector.load %arg3[%c0, %c0_1, %c0_2, %c0_3] : memref<1x1x8x32xf32, #tpu.memory_space<vmem>>, vector<1x1x8x32xf32>
    %4 = vector.shape_cast %3 : vector<1x1x8x32xf32> to vector<8x32xf32>
    %c0_4 = arith.constant 0 : index
    %c0_5 = arith.constant 0 : index
    %c0_6 = arith.constant 0 : index
    %c0_7 = arith.constant 0 : index
    %5 = vector.load %arg4[%c0_4, %c0_5, %c0_6, %c0_7] : memref<1x1x8x32xf32, #tpu.memory_space<vmem>>, vector<1x1x8x32xf32>
    %6 = vector.shape_cast %5 : vector<1x1x8x32xf32> to vector<8x32xf32>
    %c0_8 = arith.constant 0 : index
    %c0_9 = arith.constant 0 : index
    %c0_10 = arith.constant 0 : index
    %c0_11 = arith.constant 0 : index
    %7 = vector.load %arg5[%c0_8, %c0_9, %c0_10, %c0_11] : memref<1x1x8x32xf32, #tpu.memory_space<vmem>>, vector<1x1x8x32xf32>
    %8 = vector.shape_cast %7 : vector<1x1x8x32xf32> to vector<8x32xf32>
    %c0_12 = arith.constant 0 : index
    %c0_13 = arith.constant 0 : index
    %9 = vector.load %arg8[%c0_12, %c0_13] : memref<8x4xf32, #tpu.memory_space<vmem>>, vector<8x4xf32>
    %c0_14 = arith.constant 0 : index
    %c0_15 = arith.constant 0 : index
    %10 = vector.load %arg9[%c0_14, %c0_15] : memref<8x4xf32, #tpu.memory_space<vmem>>, vector<8x4xf32>
    %c0_16 = arith.constant 0 : index
    %c0_17 = arith.constant 0 : index
    %11 = vector.load %arg10[%c0_16, %c0_17] : memref<8x4xf32, #tpu.memory_space<vmem>>, vector<8x4xf32>
    %c0_18 = arith.constant 0 : index
    %c0_19 = arith.constant 0 : index
    %12 = vector.load %arg11[%c0_18, %c0_19] : memref<8x32xf32, #tpu.memory_space<vmem>>, vector<8x32xf32>
    %13 = vector.extract_strided_slice %4 {offsets = [0, 0], sizes = [8, 8], strides = [1, 1]} : vector<8x32xf32> to vector<8x8xf32>
    %14 = vector.extract_strided_slice %6 {offsets = [0, 0], sizes = [8, 8], strides = [1, 1]} : vector<8x32xf32> to vector<8x8xf32>
    %15 = vector.extract_strided_slice %8 {offsets = [0, 0], sizes = [8, 8], strides = [1, 1]} : vector<8x32xf32> to vector<8x8xf32>
    %cst = arith.constant dense<0.000000e+00> : vector<8x8xf32>
    %16 = tpu.matmul %13, %14, %cst {dimension_numbers = #tpu.dot_dimension_numbers<[1], [1], [0], [0], [0, 0, 1, 0], [], []>} : vector<8x8xf32>, vector<8x8xf32>, vector<8x8xf32> -> vector<8x8xf32>
    %17 = vector.extract_strided_slice %9 {offsets = [0, 0], sizes = [8, 1], strides = [1, 1]} : vector<8x4xf32> to vector<8x1xf32>
    %cst_20 = arith.constant dense<0xFF800000> : vector<8xf32>
    %18 = vector.multi_reduction <maximumf>, %16, %cst_20 [1] : vector<8x8xf32> to vector<8xf32>
    %19 = vector.shape_cast %18 : vector<8xf32> to vector<8x1xf32>
    %20 = arith.maximumf %17, %19 : vector<8x1xf32>
    %21 = arith.subf %17, %20 : vector<8x1xf32>
    %22 = math.exp %21 : vector<8x1xf32>
    %23 = vector.broadcast %20 : vector<8x1xf32> to vector<8x8xf32>
    %24 = arith.subf %16, %23 : vector<8x8xf32>
    %25 = math.exp %24 : vector<8x8xf32>
    %26 = vector.extract_strided_slice %10 {offsets = [0, 0], sizes = [8, 1], strides = [1, 1]} : vector<8x4xf32> to vector<8x1xf32>
    %27 = arith.mulf %22, %26 : vector<8x1xf32>
    %cst_21 = arith.constant dense<0.000000e+00> : vector<8xf32>
    %28 = vector.multi_reduction <add>, %25, %cst_21 [1] : vector<8x8xf32> to vector<8xf32>
    %29 = vector.shape_cast %28 : vector<8xf32> to vector<8x1xf32>
    %30 = arith.addf %27, %29 : vector<8x1xf32>
    %31 = vector.extract_strided_slice %11 {offsets = [0, 0], sizes = [8, 1], strides = [1, 1]} : vector<8x4xf32> to vector<8x1xf32>
    %32 = arith.mulf %22, %31 : vector<8x1xf32>
    %33 = arith.mulf %25, %16 : vector<8x8xf32>
    %cst_22 = arith.constant dense<0.000000e+00> : vector<8xf32>
    %34 = vector.multi_reduction <add>, %33, %cst_22 [1] : vector<8x8xf32> to vector<8xf32>
    %35 = vector.shape_cast %34 : vector<8xf32> to vector<8x1xf32>
    %36 = arith.addf %32, %35 : vector<8x1xf32>
    %cst_23 = arith.constant dense<0.000000e+00> : vector<8x8xf32>
    %37 = tpu.matmul %25, %15, %cst_23 {dimension_numbers = #tpu.dot_dimension_numbers<[1], [0], [0], [1], [0, 0, 1, 1], [], []>} : vector<8x8xf32>, vector<8x8xf32>, vector<8x8xf32> -> vector<8x8xf32>
    %38 = vector.shape_cast %22 : vector<8x1xf32> to vector<8x1xf32>
    %39 = vector.broadcast %38 : vector<8x1xf32> to vector<8x8xf32>
    %40 = vector.extract_strided_slice %4 {offsets = [0, 8], sizes = [8, 8], strides = [1, 1]} : vector<8x32xf32> to vector<8x8xf32>
    %41 = vector.extract_strided_slice %6 {offsets = [0, 8], sizes = [8, 8], strides = [1, 1]} : vector<8x32xf32> to vector<8x8xf32>
    %42 = vector.extract_strided_slice %8 {offsets = [0, 8], sizes = [8, 8], strides = [1, 1]} : vector<8x32xf32> to vector<8x8xf32>
    %cst_24 = arith.constant dense<0.000000e+00> : vector<8x8xf32>
    %43 = tpu.matmul %40, %41, %cst_24 {dimension_numbers = #tpu.dot_dimension_numbers<[1], [1], [0], [0], [0, 0, 1, 0], [], []>} : vector<8x8xf32>, vector<8x8xf32>, vector<8x8xf32> -> vector<8x8xf32>
    %44 = vector.extract_strided_slice %9 {offsets = [0, 1], sizes = [8, 1], strides = [1, 1]} : vector<8x4xf32> to vector<8x1xf32>
    %cst_25 = arith.constant dense<0xFF800000> : vector<8xf32>
    %45 = vector.multi_reduction <maximumf>, %43, %cst_25 [1] : vector<8x8xf32> to vector<8xf32>
    %46 = vector.shape_cast %45 : vector<8xf32> to vector<8x1xf32>
    %47 = arith.maximumf %44, %46 : vector<8x1xf32>
    %48 = arith.subf %44, %47 : vector<8x1xf32>
    %49 = math.exp %48 : vector<8x1xf32>
    %50 = vector.broadcast %47 : vector<8x1xf32> to vector<8x8xf32>
    %51 = arith.subf %43, %50 : vector<8x8xf32>
    %52 = math.exp %51 : vector<8x8xf32>
    %53 = vector.extract_strided_slice %10 {offsets = [0, 1], sizes = [8, 1], strides = [1, 1]} : vector<8x4xf32> to vector<8x1xf32>
    %54 = arith.mulf %49, %53 : vector<8x1xf32>
    %cst_26 = arith.constant dense<0.000000e+00> : vector<8xf32>
    %55 = vector.multi_reduction <add>, %52, %cst_26 [1] : vector<8x8xf32> to vector<8xf32>
    %56 = vector.shape_cast %55 : vector<8xf32> to vector<8x1xf32>
    %57 = arith.addf %54, %56 : vector<8x1xf32>
    %58 = vector.extract_strided_slice %11 {offsets = [0, 1], sizes = [8, 1], strides = [1, 1]} : vector<8x4xf32> to vector<8x1xf32>
    %59 = arith.mulf %49, %58 : vector<8x1xf32>
    %60 = arith.mulf %52, %43 : vector<8x8xf32>
    %cst_27 = arith.constant dense<0.000000e+00> : vector<8xf32>
    %61 = vector.multi_reduction <add>, %60, %cst_27 [1] : vector<8x8xf32> to vector<8xf32>
    %62 = vector.shape_cast %61 : vector<8xf32> to vector<8x1xf32>
    %63 = arith.addf %59, %62 : vector<8x1xf32>
    %cst_28 = arith.constant dense<0.000000e+00> : vector<8x8xf32>
    %64 = tpu.matmul %52, %42, %cst_28 {dimension_numbers = #tpu.dot_dimension_numbers<[1], [0], [0], [1], [0, 0, 1, 1], [], []>} : vector<8x8xf32>, vector<8x8xf32>, vector<8x8xf32> -> vector<8x8xf32>
    %65 = vector.shape_cast %49 : vector<8x1xf32> to vector<8x1xf32>
    %66 = vector.broadcast %65 : vector<8x1xf32> to vector<8x8xf32>
    %67 = vector.extract_strided_slice %4 {offsets = [0, 16], sizes = [8, 8], strides = [1, 1]} : vector<8x32xf32> to vector<8x8xf32>
    %68 = vector.extract_strided_slice %6 {offsets = [0, 16], sizes = [8, 8], strides = [1, 1]} : vector<8x32xf32> to vector<8x8xf32>
    %69 = vector.extract_strided_slice %8 {offsets = [0, 16], sizes = [8, 8], strides = [1, 1]} : vector<8x32xf32> to vector<8x8xf32>
    %cst_29 = arith.constant dense<0.000000e+00> : vector<8x8xf32>
    %70 = tpu.matmul %67, %68, %cst_29 {dimension_numbers = #tpu.dot_dimension_numbers<[1], [1], [0], [0], [0, 0, 1, 0], [], []>} : vector<8x8xf32>, vector<8x8xf32>, vector<8x8xf32> -> vector<8x8xf32>
    %71 = vector.extract_strided_slice %9 {offsets = [0, 2], sizes = [8, 1], strides = [1, 1]} : vector<8x4xf32> to vector<8x1xf32>
    %cst_30 = arith.constant dense<0xFF800000> : vector<8xf32>
    %72 = vector.multi_reduction <maximumf>, %70, %cst_30 [1] : vector<8x8xf32> to vector<8xf32>
    %73 = vector.shape_cast %72 : vector<8xf32> to vector<8x1xf32>
    %74 = arith.maximumf %71, %73 : vector<8x1xf32>
    %75 = arith.subf %71, %74 : vector<8x1xf32>
    %76 = math.exp %75 : vector<8x1xf32>
    %77 = vector.broadcast %74 : vector<8x1xf32> to vector<8x8xf32>
    %78 = arith.subf %70, %77 : vector<8x8xf32>
    %79 = math.exp %78 : vector<8x8xf32>
    %80 = vector.extract_strided_slice %10 {offsets = [0, 2], sizes = [8, 1], strides = [1, 1]} : vector<8x4xf32> to vector<8x1xf32>
    %81 = arith.mulf %76, %80 : vector<8x1xf32>
    %cst_31 = arith.constant dense<0.000000e+00> : vector<8xf32>
    %82 = vector.multi_reduction <add>, %79, %cst_31 [1] : vector<8x8xf32> to vector<8xf32>
    %83 = vector.shape_cast %82 : vector<8xf32> to vector<8x1xf32>
    %84 = arith.addf %81, %83 : vector<8x1xf32>
    %85 = vector.extract_strided_slice %11 {offsets = [0, 2], sizes = [8, 1], strides = [1, 1]} : vector<8x4xf32> to vector<8x1xf32>
    %86 = arith.mulf %76, %85 : vector<8x1xf32>
    %87 = arith.mulf %79, %70 : vector<8x8xf32>
    %cst_32 = arith.constant dense<0.000000e+00> : vector<8xf32>
    %88 = vector.multi_reduction <add>, %87, %cst_32 [1] : vector<8x8xf32> to vector<8xf32>
    %89 = vector.shape_cast %88 : vector<8xf32> to vector<8x1xf32>
    %90 = arith.addf %86, %89 : vector<8x1xf32>
    %cst_33 = arith.constant dense<0.000000e+00> : vector<8x8xf32>
    %91 = tpu.matmul %79, %69, %cst_33 {dimension_numbers = #tpu.dot_dimension_numbers<[1], [0], [0], [1], [0, 0, 1, 1], [], []>} : vector<8x8xf32>, vector<8x8xf32>, vector<8x8xf32> -> vector<8x8xf32>
    %92 = vector.shape_cast %76 : vector<8x1xf32> to vector<8x1xf32>
    %93 = vector.broadcast %92 : vector<8x1xf32> to vector<8x8xf32>
    %94 = vector.extract_strided_slice %4 {offsets = [0, 24], sizes = [8, 8], strides = [1, 1]} : vector<8x32xf32> to vector<8x8xf32>
    %95 = vector.extract_strided_slice %6 {offsets = [0, 24], sizes = [8, 8], strides = [1, 1]} : vector<8x32xf32> to vector<8x8xf32>
    %96 = vector.extract_strided_slice %8 {offsets = [0, 24], sizes = [8, 8], strides = [1, 1]} : vector<8x32xf32> to vector<8x8xf32>
    %cst_34 = arith.constant dense<0.000000e+00> : vector<8x8xf32>
    %97 = tpu.matmul %94, %95, %cst_34 {dimension_numbers = #tpu.dot_dimension_numbers<[1], [1], [0], [0], [0, 0, 1, 0], [], []>} : vector<8x8xf32>, vector<8x8xf32>, vector<8x8xf32> -> vector<8x8xf32>
    %98 = vector.extract_strided_slice %9 {offsets = [0, 3], sizes = [8, 1], strides = [1, 1]} : vector<8x4xf32> to vector<8x1xf32>
    %cst_35 = arith.constant dense<0xFF800000> : vector<8xf32>
    %99 = vector.multi_reduction <maximumf>, %97, %cst_35 [1] : vector<8x8xf32> to vector<8xf32>
    %100 = vector.shape_cast %99 : vector<8xf32> to vector<8x1xf32>
    %101 = arith.maximumf %98, %100 : vector<8x1xf32>
    %102 = arith.subf %98, %101 : vector<8x1xf32>
    %103 = math.exp %102 : vector<8x1xf32>
    %104 = vector.broadcast %101 : vector<8x1xf32> to vector<8x8xf32>
    %105 = arith.subf %97, %104 : vector<8x8xf32>
    %106 = math.exp %105 : vector<8x8xf32>
    %107 = vector.extract_strided_slice %10 {offsets = [0, 3], sizes = [8, 1], strides = [1, 1]} : vector<8x4xf32> to vector<8x1xf32>
    %108 = arith.mulf %103, %107 : vector<8x1xf32>
    %cst_36 = arith.constant dense<0.000000e+00> : vector<8xf32>
    %109 = vector.multi_reduction <add>, %106, %cst_36 [1] : vector<8x8xf32> to vector<8xf32>
    %110 = vector.shape_cast %109 : vector<8xf32> to vector<8x1xf32>
    %111 = arith.addf %108, %110 : vector<8x1xf32>
    %112 = vector.extract_strided_slice %11 {offsets = [0, 3], sizes = [8, 1], strides = [1, 1]} : vector<8x4xf32> to vector<8x1xf32>
    %113 = arith.mulf %103, %112 : vector<8x1xf32>
    %114 = arith.mulf %106, %97 : vector<8x8xf32>
    %cst_37 = arith.constant dense<0.000000e+00> : vector<8xf32>
    %115 = vector.multi_reduction <add>, %114, %cst_37 [1] : vector<8x8xf32> to vector<8xf32>
    %116 = vector.shape_cast %115 : vector<8xf32> to vector<8x1xf32>
    %117 = arith.addf %113, %116 : vector<8x1xf32>
    %cst_38 = arith.constant dense<0.000000e+00> : vector<8x8xf32>
    %118 = tpu.matmul %106, %96, %cst_38 {dimension_numbers = #tpu.dot_dimension_numbers<[1], [0], [0], [1], [0, 0, 1, 1], [], []>} : vector<8x8xf32>, vector<8x8xf32>, vector<8x8xf32> -> vector<8x8xf32>
    %119 = vector.shape_cast %103 : vector<8x1xf32> to vector<8x1xf32>
    %120 = vector.broadcast %119 : vector<8x1xf32> to vector<8x8xf32>
    %121 = tpu.concatenate %20, %47, %74, %101 in 1 : vector<8x1xf32>, vector<8x1xf32>, vector<8x1xf32>, vector<8x1xf32> -> vector<8x4xf32>
    %c0_39 = arith.constant 0 : index
    %c0_40 = arith.constant 0 : index
    %122 = vector.load %arg8[%c0_39, %c0_40] : memref<8x4xf32, #tpu.memory_space<vmem>>, vector<8x4xf32>
    tpu.vector_store %arg8[%c0_39, %c0_40], %121 {strides = array<i32>} : memref<8x4xf32, #tpu.memory_space<vmem>>, vector<8x4xf32>,
    %123 = tpu.concatenate %30, %57, %84, %111 in 1 : vector<8x1xf32>, vector<8x1xf32>, vector<8x1xf32>, vector<8x1xf32> -> vector<8x4xf32>
    %c0_41 = arith.constant 0 : index
    %c0_42 = arith.constant 0 : index
    %124 = vector.load %arg9[%c0_41, %c0_42] : memref<8x4xf32, #tpu.memory_space<vmem>>, vector<8x4xf32>
    tpu.vector_store %arg9[%c0_41, %c0_42], %123 {strides = array<i32>} : memref<8x4xf32, #tpu.memory_space<vmem>>, vector<8x4xf32>,
    %125 = tpu.concatenate %36, %63, %90, %117 in 1 : vector<8x1xf32>, vector<8x1xf32>, vector<8x1xf32>, vector<8x1xf32> -> vector<8x4xf32>
    %c0_43 = arith.constant 0 : index
    %c0_44 = arith.constant 0 : index
    %126 = vector.load %arg10[%c0_43, %c0_44] : memref<8x4xf32, #tpu.memory_space<vmem>>, vector<8x4xf32>
    tpu.vector_store %arg10[%c0_43, %c0_44], %125 {strides = array<i32>} : memref<8x4xf32, #tpu.memory_space<vmem>>, vector<8x4xf32>,
    %127 = tpu.concatenate %39, %66, %93, %120 in 1 : vector<8x8xf32>, vector<8x8xf32>, vector<8x8xf32>, vector<8x8xf32> -> vector<8x32xf32>
    %128 = tpu.concatenate %37, %64, %91, %118 in 1 : vector<8x8xf32>, vector<8x8xf32>, vector<8x8xf32>, vector<8x8xf32> -> vector<8x32xf32>
    %129 = arith.mulf %127, %12 : vector<8x32xf32>
    %130 = arith.addf %129, %128 : vector<8x32xf32>
    %c0_45 = arith.constant 0 : index
    %c0_46 = arith.constant 0 : index
    %131 = vector.load %arg11[%c0_45, %c0_46] : memref<8x32xf32, #tpu.memory_space<vmem>>, vector<8x32xf32>
    tpu.vector_store %arg11[%c0_45, %c0_46], %130 {strides = array<i32>} : memref<8x32xf32, #tpu.memory_space<vmem>>, vector<8x32xf32>,
    %c0_i32_47 = arith.constant 0 : i32
    %132 = arith.cmpi eq, %arg2, %c0_i32_47 : i32
    %133 = arith.extui %132 : i1 to i32
    %c0_i32_48 = arith.constant 0 : i32
    %134 = arith.cmpi ne, %133, %c0_i32_48 : i32
    scf.if %134 {
      %c0_49 = arith.constant 0 : index
      %c0_50 = arith.constant 0 : index
      %135 = vector.load %arg9[%c0_49, %c0_50] : memref<8x4xf32, #tpu.memory_space<vmem>>, vector<8x4xf32>
      %cst_51 = arith.constant 1.000000e+00 : f32
      %136 = vector.broadcast %cst_51 : f32 to vector<8x4xf32>
      %137 = arith.divf %136, %135 : vector<8x4xf32>
      %c0_52 = arith.constant 0 : index
      %c0_53 = arith.constant 0 : index
      %138 = vector.load %arg8[%c0_52, %c0_53] : memref<8x4xf32, #tpu.memory_space<vmem>>, vector<8x4xf32>
      %139 = math.log %135 : vector<8x4xf32>
      %140 = arith.addf %138, %139 : vector<8x4xf32>
      %c0_54 = arith.constant 0 : index
      %c0_55 = arith.constant 0 : index
      %141 = vector.load %arg10[%c0_54, %c0_55] : memref<8x4xf32, #tpu.memory_space<vmem>>, vector<8x4xf32>
      %142 = arith.mulf %141, %137 : vector<8x4xf32>
      %143 = arith.subf %140, %142 : vector<8x4xf32>
      %144 = vector.shape_cast %143 : vector<8x4xf32> to vector<1x8x4xf32>
      %cst_56 = arith.constant dense<0.000000e+00> : vector<1xf32>
      %145 = vector.multi_reduction <add>, %144, %cst_56 [1, 2] : vector<1x8x4xf32> to vector<1xf32>
      %146 = vector.shape_cast %145 : vector<1xf32> to vector<1x1x1xf32>
      %147 = vector.extract %146[0, 0, 0] : f32 from vector<1x1x1xf32>
      %148 = vector.broadcast %147 : f32 to vector<1x1x8x128xf32>
      %c0_57 = arith.constant 0 : index
      %c0_58 = arith.constant 0 : index
      %c0_59 = arith.constant 0 : index
      %c0_60 = arith.constant 0 : index
      %149 = vector.load %arg7[%c0_57, %c0_58, %c0_59, %c0_60] : memref<1x1x8x128xf32, #tpu.memory_space<vmem>>, vector<1x1x8x128xf32>
      tpu.vector_store %arg7[%c0_57, %c0_58, %c0_59, %c0_60], %148 {strides = array<i32>} : memref<1x1x8x128xf32, #tpu.memory_space<vmem>>, vector<1x1x8x128xf32>,
      %150 = vector.extract_strided_slice %137 {offsets = [0, 0], sizes = [8, 1], strides = [1, 1]} : vector<8x4xf32> to vector<8x1xf32>
      %151 = vector.shape_cast %150 : vector<8x1xf32> to vector<8x1xf32>
      %152 = vector.broadcast %151 : vector<8x1xf32> to vector<8x8xf32>
      %153 = vector.extract_strided_slice %137 {offsets = [0, 1], sizes = [8, 1], strides = [1, 1]} : vector<8x4xf32> to vector<8x1xf32>
      %154 = vector.shape_cast %153 : vector<8x1xf32> to vector<8x1xf32>
      %155 = vector.broadcast %154 : vector<8x1xf32> to vector<8x8xf32>
      %156 = vector.extract_strided_slice %137 {offsets = [0, 2], sizes = [8, 1], strides = [1, 1]} : vector<8x4xf32> to vector<8x1xf32>
      %157 = vector.shape_cast %156 : vector<8x1xf32> to vector<8x1xf32>
      %158 = vector.broadcast %157 : vector<8x1xf32> to vector<8x8xf32>
      %159 = vector.extract_strided_slice %137 {offsets = [0, 3], sizes = [8, 1], strides = [1, 1]} : vector<8x4xf32> to vector<8x1xf32>
      %160 = vector.shape_cast %159 : vector<8x1xf32> to vector<8x1xf32>
      %161 = vector.broadcast %160 : vector<8x1xf32> to vector<8x8xf32>
      %162 = tpu.concatenate %152, %155, %158, %161 in 1 : vector<8x8xf32>, vector<8x8xf32>, vector<8x8xf32>, vector<8x8xf32> -> vector<8x32xf32>
      %c0_61 = arith.constant 0 : index
      %c0_62 = arith.constant 0 : index
      %163 = vector.load %arg11[%c0_61, %c0_62] : memref<8x32xf32, #tpu.memory_space<vmem>>, vector<8x32xf32>
      %164 = arith.mulf %163, %162 : vector<8x32xf32>
      %c0_63 = arith.constant 0 : index
      %c0_64 = arith.constant 0 : index
      %c0_65 = arith.constant 0 : index
      %165 = vector.load %arg6[%c0_63, %c0_64, %c0_65] : memref<1x8x32xf32, #tpu.memory_space<vmem>>, vector<1x8x32xf32>
      %166 = vector.shape_cast %165 : vector<1x8x32xf32> to vector<8x32xf32>
      %167 = vector.shape_cast %164 : vector<8x32xf32> to vector<1x8x32xf32>
      tpu.vector_store %arg6[%c0_63, %c0_64, %c0_65], %167 {strides = array<i32>} : memref<1x8x32xf32, #tpu.memory_space<vmem>>, vector<1x8x32xf32>,
    } else {
    }
    return
  }
  func.func @transform_0(%arg0: i32, %arg1: i32, %arg2: i32) -> (i32, i32, i32, i32) {
    %c0_i32 = arith.constant 0 : i32
    %c0_i32_0 = arith.constant 0 : i32
    %c0_i32_1 = arith.constant 0 : i32
    return %c0_i32, %arg0, %arg1, %c0_i32_0 : i32, i32, i32, i32
  }
  func.func @transform_1(%arg0: i32, %arg1: i32, %arg2: i32) -> (i32, i32, i32, i32) {
    %c1_i32 = arith.constant 1 : i32
    %c0_i32 = arith.constant 0 : i32
    %c0_i32_0 = arith.constant 0 : i32
    return %c1_i32, %arg0, %arg2, %c0_i32 : i32, i32, i32, i32
  }
  func.func @transform_2(%arg0: i32, %arg1: i32, %arg2: i32) -> (i32, i32, i32, i32) {
    %c2_i32 = arith.constant 2 : i32
    %c0_i32 = arith.constant 0 : i32
    %c0_i32_0 = arith.constant 0 : i32
    return %c2_i32, %arg0, %arg2, %c0_i32 : i32, i32, i32, i32
  }
  func.func @transform_3(%arg0: i32, %arg1: i32, %arg2: i32) -> (i32, i32, i32) {
    %c0_i32 = arith.constant 0 : i32
    %c0_i32_0 = arith.constant 0 : i32
    return %arg0, %arg1, %c0_i32 : i32, i32, i32
  }
  func.func @transform_4(%arg0: i32, %arg1: i32, %arg2: i32) -> (i32, i32, i32, i32) {
    %c0_i32 = arith.constant 0 : i32
    %c0_i32_0 = arith.constant 0 : i32
    %c0_i32_1 = arith.constant 0 : i32
    return %arg0, %arg1, %c0_i32, %c0_i32_0 : i32, i32, i32, i32
  }
}

</mosaic_0001>

<llo_original>
// kernel: resonance_attention_forward.5
$region0: #{resonance_attention_forward.5}
  #allocation0 [shape = 'u32[]', space=smem, size = 0x4, offset = 0x4, fixed_abs, tag = 'smem constant byte address 0x4 - core index']
  #allocation1 [shape = 'u32[72,128]{1,0:T(1,128)}', space=vmem, size = 0x9000, scoped, tag = 'internal scratch']
  #allocation2 [shape = 'f32[16,32]{1,0:T(8,128)}', space=vmem, size = 0x2000, scoped, tag = 'scratch operand']
  #allocation3 [shape = 'f32[1]{0:T(128)S(6)}', space=smem, size = 0x200, scoped, tag = 'scoped memory for resonance_attention_forward.5']
  %s0 = inlined_call_operand.<no memory space> [shape: f32[1], index: 0, kind: input, shape index: {}]
  %s1 = inlined_call_operand.vmem [shape: f32[16,32], index: 1, kind: input, shape index: {}]
  %s2 = inlined_call_operand.hbm [shape: f32[32,32], index: 2, kind: input, shape index: {}]
  %s3 = inlined_call_operand.vmem [shape: f32[1,32], index: 3, kind: input, shape index: {}]
  %s4 = inlined_call_operand.hbm [shape: f32[16,32], index: 4, kind: output, shape index: {}]
  %s5 = sld [smem:[#allocation0]]
  $region38: #{resonance_attention_forward.5} parent=0
    _
  %s7 = ssub.s32 1, %s5
  %s8 = scalar_select 0, %s7, %s5
  %9 = sst [smem:[#allocation3]] %s0
  $region1: #{resonance_attention_forward.5} parent=0
    #allocation4 [shape = 'u8[16384]{0}', space=vmem, size = 0x4000, scoped, tag = 'input window, operand 2, single buffered']
    #allocation5 [shape = 's32[1]{0}', space=sflag, size = 0x4, scoped, tag = 'scoped memory for resonance_attention_forward.5']
    #allocation6 [shape = 's32[1]{0}', space=sflag, size = 0x4, scoped, tag = 'scoped memory for resonance_attention_forward.5']
    #allocation7 [shape = 'u8[8192]{0}', space=vmem, size = 0x2000, scoped, tag = 'output window, operand 0, single buffered']
    %10 = vsyncpa [#allocation5], 0
    %11 = vsyncpa [#allocation6], 0
    // Predicated region
    $region2: #{resonance_attention_forward.5} parent=1 // pred_check
      _
    $region3: #{resonance_attention_forward.5} parent=1 // pred_check_branch
      %13 = sbr.rel (0) target = $region5
    $region4: #{resonance_attention_forward.5} parent=1 // pred_region
      _
    $region5: #{resonance_attention_forward.5} parent=1 // pred_fallthru
      _
    // Predicated region
    $region6: #{resonance_attention_forward.5} parent=1 // pred_check
      _
    $region7: #{resonance_attention_forward.5} parent=1 // pred_check_branch
      %15 = sbr.rel (0) target = $region9
    $region8: #{resonance_attention_forward.5} parent=1 // pred_region
      _
    $region9: #{resonance_attention_forward.5} parent=1 // pred_fallthru
      _
    // Predicated region
    $region10: #{resonance_attention_forward.5} parent=1 // pred_check
      _
    $region11: #{resonance_attention_forward.5} parent=1 // pred_check_branch
      %17 = sbr.rel (0) target = $region13
    $region12: #{resonance_attention_forward.5} parent=1 // pred_region
      %19 = vsyncadd [#allocation5], 0
      %s20 = sshll.u32 %s2, 4
      %s21 = int_to_ptr.hbm [resolvable:$true] %s20
      %s22 = sshll.u32 [#allocation4], 4
      %s23 = int_to_ptr.vmem [resolvable:$true] %s22
      %28 = dma.hbm_to_vmem [thread:$0]  %s21, 512, %s23, [#allocation5], 128, 128, 8
    $region13: #{resonance_attention_forward.5} parent=1 // pred_fallthru
      _
    // Predicated region
    $region14: #{resonance_attention_forward.5} parent=1 // pred_check
      _
    $region15: #{resonance_attention_forward.5} parent=1 // pred_check_branch
      %30 = sbr.rel (0) target = $region17
    $region16: #{resonance_attention_forward.5} parent=1 // pred_region
      _
    $region17: #{resonance_attention_forward.5} parent=1 // pred_fallthru
      _
    // Predicated region
    $region18: #{resonance_attention_forward.5} parent=1 // pred_check
      _
    $region19: #{resonance_attention_forward.5} parent=1 // pred_check_branch
      %32 = sbr.rel (0) target = $region21
    $region20: #{resonance_attention_forward.5} parent=1 // pred_region
      %34 = dma.done [#allocation5], 512
    $region21: #{resonance_attention_forward.5} parent=1 // pred_fallthru
      _
    %p35 = scmp.eq.s32.totalorder 0, 0
    // Predicated region
    $region22: #{resonance_attention_forward.5} parent=1 // pred_check
      %p36 = pneg %p35
    $region23: #{resonance_attention_forward.5} parent=1 // pred_check_branch
      %38 = sbr.rel (%p36) target = $region25
    $region24: #{resonance_attention_forward.5} parent=1 // pred_region
      %vm39 = vcmask 261120
      %40 = vst.msk [vmem:[#allocation2] sm:$0xff] %vm39, 0.0
      %41 = vst.msk [vmem:[#allocation2 + $0x8] sm:$0xff] %vm39, 0.0
    $region25: #{resonance_attention_forward.5} parent=1 // pred_fallthru
      _
    %v42 = vld [vmem:[#allocation2] sm:$0xff]
    %v43 = vld [vmem:[#allocation2 + $0x8] sm:$0xff]
    %v44 = vld [vmem:[%s1] sm:$0xff]
    %v45 = vld [vmem:[%s1 + $0x8] sm:$0xff]
    %v46 = vld [vmem:[#allocation4] sm:$0xff]
    %v47 = vld [vmem:[#allocation4 + $0x8] sm:$0xff]
    %v48 = vld [vmem:[#allocation4 + $0x10] sm:$0xff]
    %v49 = vld [vmem:[#allocation4 + $0x18] sm:$0xff]
    %vm50 = vcmask 261120
    %v52 = vsel %vm50, %v44, 0
    %v55 = vsel %vm50, %v45, 0
    %57 = vmatpush.msra.mxu0 0.0
    %58 = vmatpush.msra.mxu0 0.0
    %59 = vmatpush.msra.mxu0 0.0
    %60 = vmatpush.msra.mxu0 0.0
    %61 = vmatpush.msra.mxu0 0.0
    %62 = vmatpush.msra.mxu0 0.0
    %63 = vmatpush.msra.mxu0 0.0
    %64 = vmatpush.msra.mxu0 0.0
    %65 = vmatpush.msra.mxu0 0.0
    %66 = vmatpush.msra.mxu0 0.0
    %67 = vmatpush.msra.mxu0 0.0
    %68 = vmatpush.msra.mxu0 0.0
    %69 = vmatpush.msra.mxu0 %v49
    %70 = vmatpush.msra.mxu0 %v48
    %71 = vmatpush.msra.mxu0 %v47
    %72 = vmatpush.msra.mxu0 %v46
    %73 = vmatmul.f32.gmra.mxu0 %v52
    %v74 = vpop.f32.mrf.mxu0
    %v75 = vadd.f32 0.0, %v74
    %76 = vmatmul.f32.gmra.mxu0 %v55
    %v77 = vpop.f32.mrf.mxu0
    %v78 = vadd.f32 0.0, %v77
    %79 = vdwg.mxu0
    %v80 = vadd.f32 %v42, %v75
    %v81 = vadd.f32 %v43, %v78
    %82 = vst.msk [vmem:[#allocation2] sm:$0xff] %vm50, %v80
    %83 = vst.msk [vmem:[#allocation2 + $0x8] sm:$0xff] %vm50, %v81
    // Predicated region
    $region26: #{resonance_attention_forward.5} parent=1 // pred_check
      %p84 = pneg %p35
    $region27: #{resonance_attention_forward.5} parent=1 // pred_check_branch
      %86 = sbr.rel (%p84) target = $region29
    $region28: #{resonance_attention_forward.5} parent=1 // pred_region
      %v87 = vld [vmem:[#allocation2] sm:$0xff]
      %v88 = vld [vmem:[#allocation2 + $0x8] sm:$0xff]
      %s89 = sld [smem:[#allocation3]]
      %v90 = vstv %s89
      %v91 = vmul.f32 %v87, %v90
      %v92 = vmul.f32 %v88, %v90
      %v93 = vld [vmem:[%s3] sm:$0x1]
      %v95 = vperm.slane %v93, 0
      %v97 = vadd.f32 %v91, %v95
      %v98 = vadd.f32 %v92, %v95
      %99 = vst.msk [vmem:[#allocation7] sm:$0xff] %vm50, %v97
      %100 = vst.msk [vmem:[#allocation7 + $0x8] sm:$0xff] %vm50, %v98
    $region29: #{resonance_attention_forward.5} parent=1 // pred_fallthru
      _
    // Predicated region
    $region30: #{resonance_attention_forward.5} parent=1 // pred_check
      _
    $region31: #{resonance_attention_forward.5} parent=1 // pred_check_branch
      %102 = sbr.rel (0) target = $region33
    $region32: #{resonance_attention_forward.5} parent=1 // pred_region
      %104 = vsyncadd [#allocation6], 0
      %s105 = sshll.u32 [#allocation7], 4
      %s106 = int_to_ptr.vmem [resolvable:$true] %s105
      %s107 = sshll.u32 %s4, 4
      %s108 = int_to_ptr.hbm [resolvable:$true] %s107
      %113 = dma.vmem_to_hbm [thread:$0]  %s106, 256, %s108, [#allocation6], 128, 128, 8
    $region33: #{resonance_attention_forward.5} parent=1 // pred_fallthru
      _
    // Predicated region
    $region34: #{resonance_attention_forward.5} parent=1 // pred_check
      _
    $region35: #{resonance_attention_forward.5} parent=1 // pred_check_branch
      %115 = sbr.rel (0) target = $region37
    $region36: #{resonance_attention_forward.5} parent=1 // pred_region
      %117 = dma.done [#allocation6], 256
    $region37: #{resonance_attention_forward.5} parent=1 // pred_fallthru
      _
    %118 = vsyncpa [#allocation5], 1
    %119 = vsyncpa [#allocation6], 1

// kernel: resonance_attention_forward.3
$region0: #{resonance_attention_forward.3}
  #allocation0 [shape = 'u32[]', space=smem, size = 0x4, offset = 0x4, fixed_abs, tag = 'smem constant byte address 0x4 - core index']
  #allocation1 [shape = 'u32[72,128]{1,0:T(1,128)}', space=vmem, size = 0x9000, scoped, tag = 'internal scratch']
  #allocation2 [shape = 'f32[16,32]{1,0:T(8,128)}', space=vmem, size = 0x2000, scoped, tag = 'scratch operand']
  %s0 = inlined_call_operand.hbm [shape: f32[16,32], index: 0, kind: input, shape index: {}]
  %s1 = inlined_call_operand.hbm [shape: f32[3,32,32], index: 1, kind: input, shape index: {}]
  %s2 = inlined_call_operand.hbm [shape: f32[3,1,32], index: 2, kind: input, shape index: {}]
  %s3 = inlined_call_operand.vmem [shape: f32[3,16,32], index: 3, kind: output, shape index: {}]
  %s4 = sld [smem:[#allocation0]]
  $region65: #{resonance_attention_forward.3} parent=0
    _
  %s6 = ssub.s32 1, %s4
  %s7 = scalar_select 0, %s6, %s4
  $region1: #{resonance_attention_forward.3} parent=0
    #allocation3 [shape = 'u8[8192]{0}', space=vmem, size = 0x2000, scoped, tag = 'input window, operand 0, single buffered']
    #allocation4 [shape = 's32[2]{0}', space=sflag, size = 0x8, scoped, tag = 'scoped memory for resonance_attention_forward.3']
    #allocation5 [shape = 'u8[32768]{0}', space=vmem, size = 0x8000, scoped, tag = 'input window, operand 1']
    #allocation6 [shape = 's32[2]{0}', space=sflag, size = 0x8, scoped, tag = 'scoped memory for resonance_attention_forward.3']
    #allocation7 [shape = 'u8[1024]{0}', space=vmem, size = 0x400, scoped, tag = 'input window, operand 2']
    %8 = vsyncpa [#allocation4], 0
    %9 = vsyncpa [#allocation6], 0
    %s10 = scalar_lea.sflag [#allocation6], 1
    %11 = vsyncpa %s10, 0
    loop: start=0, step=1, limit=5
    $region2: #{resonance_attention_forward.3} parent=1 // loop_pre_header
      _
    $region3: #{resonance_attention_forward.3} parent=1 // loop_header
      %s13 = sphi 0, %s17
      %p14 = scmp.ge.s32.totalorder %s13, 5
      %s20 = sphi 0, %s46
      %s21 = sphi 0, %s42
      %s22 = sphi 0, %s38
      %s23 = sphi 0, %s34
      %s24 = sphi 0, %s20
      %s25 = sphi 0, %s21
      %s26 = sphi 0, %s22
      %s27 = sphi 0, %s23
      %s28 = sphi 0, %s24
      %s29 = sphi 0, %s25
      %s30 = sphi 0, %s26
      %s31 = sphi 0, %s27
      %s51 = sphi 0, %s53
      %s54 = sphi 0, %s51
      %s55 = sphi 0, %s54
      %s71 = sphi 0, %s55
      %s81 = sphi 0, %s83
      %s84 = sphi 0, %s81
      %s85 = sphi 0, %s84
      %s101 = sphi 0, %s85
      %s109 = sphi 0, %s111
      %s112 = sphi 0, %s109
      %s113 = sphi 0, %s112
      %s129 = sphi 0, %s113
      %s139 = sphi 0, %s141
      %s142 = sphi 0, %s139
      %s143 = sphi 0, %s142
      %s159 = sphi 0, %s143
    $region4: #{resonance_attention_forward.3} parent=1 // loop_header_branch
      %16 = sbr.rel (%p14) target = $region8
    $region5: #{resonance_attention_forward.3} parent=1 // loop_body
      %s18 = ssub.s32 %s13, 1
      %s19 = ssub.s32 %s13, 2
      %s32 = sadd.s32 1, %s23
      %p33 = scmp.ge.s32.totalorder %s32, 1
      %s34 = scalar_select %p33, 0, %s32
      %s35 = sadd.s32 1, %s22
      %s36 = scalar_select %p33, %s35, %s22
      %p37 = scmp.ge.s32.totalorder %s36, 1
      %s38 = scalar_select %p37, 0, %s36
      %s39 = sadd.s32 1, %s21
      %s40 = scalar_select %p37, %s39, %s21
      %p41 = scmp.ge.s32.totalorder %s40, 3
      %s42 = scalar_select %p41, 0, %s40
      %s43 = sadd.s32 1, %s20
      %s44 = scalar_select %p41, %s43, %s20
      %p45 = scmp.ge.s32.totalorder %s44, 1
      %s46 = scalar_select %p45, 0, %s44
      %s47 = ssub.s32 %s20, %s46
      %s48 = ssub.s32 %s23, %s34
      %s49 = sor.u32 %s47, %s48
      %p50 = scmp.eq.s32.totalorder %s49, 0
      %s52 = sadd.s32 %s51, 1
      %s53 = scalar_select %p50, %s51, %s52
      %p56 = pneg %p50
      %p57 = scmp.eq.s32.totalorder %s13, 2
      %p58 = por %p56, %p57
      %p59 = scmp.ne.s32.totalorder %s51, %s54
      %p60 = scmp.eq.s32.totalorder %s13, 0
      %p61 = por %p59, %p60
      %p62 = scmp.ne.s32.totalorder %s51, %s54
      %p63 = scmp.eq.s32.totalorder %s18, 2
      %p64 = por %p62, %p63
      %p65 = scmp.ne.s32.totalorder %s54, %s55
      %p66 = scmp.eq.s32.totalorder %s18, 0
      %p67 = por %p65, %p66
      %p68 = scmp.ne.s32.totalorder %s54, %s55
      %p69 = scmp.eq.s32.totalorder %s19, 2
      %p70 = por %p68, %p69
      %p72 = scmp.ne.s32.totalorder %s55, %s71
      %p73 = scmp.eq.s32.totalorder %s19, 0
      %p74 = por %p72, %p73
      %s75 = ssub.s32 %s21, %s42
      %s76 = ssub.s32 %s23, %s34
      %s77 = sor.u32 %s75, %s76
      %s78 = ssub.s32 %s22, %s38
      %s79 = sor.u32 %s77, %s78
      %p80 = scmp.eq.s32.totalorder %s79, 0
      %s82 = sadd.s32 %s81, 1
      %s83 = scalar_select %p80, %s81, %s82
      %p86 = pneg %p80
      %p87 = scmp.eq.s32.totalorder %s13, 2
      %p88 = por %p86, %p87
      %p89 = scmp.ne.s32.totalorder %s81, %s84
      %p90 = scmp.eq.s32.totalorder %s13, 0
      %p91 = por %p89, %p90
      %p92 = scmp.ne.s32.totalorder %s81, %s84
      %p93 = scmp.eq.s32.totalorder %s18, 2
      %p94 = por %p92, %p93
      %p95 = scmp.ne.s32.totalorder %s84, %s85
      %p96 = scmp.eq.s32.totalorder %s18, 0
      %p97 = por %p95, %p96
      %p98 = scmp.ne.s32.totalorder %s84, %s85
      %p99 = scmp.eq.s32.totalorder %s19, 2
      %p100 = por %p98, %p99
      %p102 = scmp.ne.s32.totalorder %s85, %s101
      %p103 = scmp.eq.s32.totalorder %s19, 0
      %p104 = por %p102, %p103
      %s105 = ssub.s32 %s21, %s42
      %s106 = ssub.s32 %s22, %s38
      %s107 = sor.u32 %s105, %s106
      %p108 = scmp.eq.s32.totalorder %s107, 0
      %s110 = sadd.s32 %s109, 1
      %s111 = scalar_select %p108, %s109, %s110
      %p114 = pneg %p108
      %p115 = scmp.eq.s32.totalorder %s13, 2
      %p116 = por %p114, %p115
      %p117 = scmp.ne.s32.totalorder %s109, %s112
      %p118 = scmp.eq.s32.totalorder %s13, 0
      %p119 = por %p117, %p118
      %p120 = scmp.ne.s32.totalorder %s109, %s112
      %p121 = scmp.eq.s32.totalorder %s18, 2
      %p122 = por %p120, %p121
      %p123 = scmp.ne.s32.totalorder %s112, %s113
      %p124 = scmp.eq.s32.totalorder %s18, 0
      %p125 = por %p123, %p124
      %p126 = scmp.ne.s32.totalorder %s112, %s113
      %p127 = scmp.eq.s32.totalorder %s19, 2
      %p128 = por %p126, %p127
      %p130 = scmp.ne.s32.totalorder %s113, %s129
      %p131 = scmp.eq.s32.totalorder %s19, 0
      %p132 = por %p130, %p131
      %s133 = ssub.s32 %s21, %s42
      %s134 = ssub.s32 %s20, %s46
      %s135 = sor.u32 %s133, %s134
      %s136 = ssub.s32 %s22, %s38
      %s137 = sor.u32 %s135, %s136
      %p138 = scmp.eq.s32.totalorder %s137, 0
      %s140 = sadd.s32 %s139, 1
      %s141 = scalar_select %p138, %s139, %s140
      %p144 = pneg %p138
      %p145 = scmp.eq.s32.totalorder %s13, 2
      %p146 = por %p144, %p145
      %p147 = scmp.ne.s32.totalorder %s139, %s142
      %p148 = scmp.eq.s32.totalorder %s13, 0
      %p149 = por %p147, %p148
      %p150 = scmp.ne.s32.totalorder %s139, %s142
      %p151 = scmp.eq.s32.totalorder %s18, 2
      %p152 = por %p150, %p151
      %p153 = scmp.ne.s32.totalorder %s142, %s143
      %p154 = scmp.eq.s32.totalorder %s18, 0
      %p155 = por %p153, %p154
      %p156 = scmp.ne.s32.totalorder %s142, %s143
      %p157 = scmp.eq.s32.totalorder %s19, 2
      %p158 = por %p156, %p157
      %p160 = scmp.ne.s32.totalorder %s143, %s159
      %p161 = scmp.eq.s32.totalorder %s19, 0
      %p162 = por %p160, %p161
      %p163 = scmp.le.s32.totalorder 1, %s13
      %p164 = scmp.lt.s32.totalorder %s13, 4
      %p165 = pnand %p163, %p164
      %p166 = pneg %p165
      // Predicated region
      $region9: #{resonance_attention_forward.3} parent=5 // pred_check
        _
      $region10: #{resonance_attention_forward.3} parent=5 // pred_check_branch
        %168 = sbr.rel (%p165) target = $region12
      $region11: #{resonance_attention_forward.3} parent=5 // pred_region
        %s169 = ssub.s32 %s13, 1
        // Predicated region
        $region13: #{resonance_attention_forward.3} parent=11 // pred_check
          %p170 = pneg %p67
        $region14: #{resonance_attention_forward.3} parent=11 // pred_check_branch
          %172 = sbr.rel (%p170) target = $region16
        $region15: #{resonance_attention_forward.3} parent=11 // pred_region
          %s173 = smul.u32 2, %s24
          %175 = vsyncadd [#allocation4], 0
          %s176 = sadd.s32 %s27, %s173
          %s177 = smul.addr %s176, 8
          %s178 = scalar_lea.hbm %s0, %s177
          %s179 = sshll.u32 %s178, 4
          %s180 = int_to_ptr.hbm [resolvable:$true] %s179
          %s181 = sshll.u32 [#allocation3], 4
          %s182 = int_to_ptr.vmem [resolvable:$true] %s181
          %187 = dma.hbm_to_vmem [thread:$0]  %s180, 256, %s182, [#allocation4], 128, 128, 8
        $region16: #{resonance_attention_forward.3} parent=11 // pred_fallthru
          _
      $region12: #{resonance_attention_forward.3} parent=5 // pred_fallthru
        _
      %p188 = scmp.lt.s32.totalorder %s13, 3
      // Predicated region
      $region17: #{resonance_attention_forward.3} parent=5 // pred_check
        %p189 = pneg %p188
      $region18: #{resonance_attention_forward.3} parent=5 // pred_check_branch
        %191 = sbr.rel (%p189) target = $region20
      $region19: #{resonance_attention_forward.3} parent=5 // pred_region
        // Predicated region
        $region21: #{resonance_attention_forward.3} parent=19 // pred_check
          %p192 = pneg %p91
        $region22: #{resonance_attention_forward.3} parent=19 // pred_check_branch
          %194 = sbr.rel (%p192) target = $region24
        $region23: #{resonance_attention_forward.3} parent=19 // pred_region
          %s195 = sand.u32 %s13, 1
          %s196 = scalar_lea.sflag [#allocation6], %s195
          %s197 = sand.u32 %s81, 1
          %s198 = smul.addr %s197, 32
          %s199 = scalar_lea.vmem [#allocation5], %s198
          %s200 = smul.u32 4, %s23
          %202 = vsyncadd %s196, 0
          %s203 = sadd.s32 %s22, %s200
          %s204 = smul.addr %s21, 4
          %s205 = sadd.s32 %s203, %s204
          %s206 = smul.addr %s205, 8
          %s207 = scalar_lea.hbm %s1, %s206
          %s208 = sshll.u32 %s207, 4
          %s209 = int_to_ptr.hbm [resolvable:$true] %s208
          %s210 = sshll.u32 %s199, 4
          %s211 = int_to_ptr.vmem [resolvable:$true] %s210
          %216 = dma.hbm_to_vmem [thread:$0]  %s209, 512, %s211, %s196, 128, 128, 8
        $region24: #{resonance_attention_forward.3} parent=19 // pred_fallthru
          _
        // Predicated region
        $region25: #{resonance_attention_forward.3} parent=19 // pred_check
          %p217 = pneg %p119
        $region26: #{resonance_attention_forward.3} parent=19 // pred_check_branch
          %219 = sbr.rel (%p217) target = $region28
        $region27: #{resonance_attention_forward.3} parent=19 // pred_region
          %s220 = sand.u32 %s13, 1
          %s221 = scalar_lea.sflag [#allocation6], %s220
          %s222 = sand.u32 %s109, 1
          %s223 = scalar_lea.vmem [#allocation7], %s222
          %225 = vsyncadd %s221, 0
          %s226 = sadd.s32 %s22, %s21
          %s227 = scalar_lea.hbm %s2, %s226
          %s229 = sshll.u32 %s227, 4
          %s230 = int_to_ptr.hbm [resolvable:$true] %s229
          %s231 = sshll.u32 %s223, 4
          %s232 = int_to_ptr.vmem [resolvable:$true] %s231
          %234 = dma.hbm_to_vmem [thread:$0]  %s230, 16, %s232, %s221
        $region28: #{resonance_attention_forward.3} parent=19 // pred_fallthru
          _
      $region20: #{resonance_attention_forward.3} parent=5 // pred_fallthru
        _
      %p235 = scmp.le.s32.totalorder 1, %s13
      %p236 = scmp.lt.s32.totalorder %s13, 4
      %p237 = pnand %p235, %p236
      %p238 = pneg %p237
      // Predicated region
      $region29: #{resonance_attention_forward.3} parent=5 // pred_check
        _
      $region30: #{resonance_attention_forward.3} parent=5 // pred_check_branch
        %240 = sbr.rel (%p237) target = $region32
      $region31: #{resonance_attention_forward.3} parent=5 // pred_region
        %s241 = ssub.s32 %s13, 1
        // Predicated region
        $region33: #{resonance_attention_forward.3} parent=31 // pred_check
          %p242 = pneg %p67
        $region34: #{resonance_attention_forward.3} parent=31 // pred_check_branch
          %244 = sbr.rel (%p242) target = $region36
        $region35: #{resonance_attention_forward.3} parent=31 // pred_region
          %246 = dma.done [#allocation4], 256
        $region36: #{resonance_attention_forward.3} parent=31 // pred_fallthru
          _
        %s247 = sand.u32 %s18, 1
        %s248 = scalar_lea.sflag [#allocation6], %s247
        %s249 = sand.u32 %s84, 1
        %s250 = smul.addr %s249, 32
        %s251 = scalar_lea.vmem [#allocation5], %s250
        // Predicated region
        $region37: #{resonance_attention_forward.3} parent=31 // pred_check
          %p252 = pneg %p97
        $region38: #{resonance_attention_forward.3} parent=31 // pred_check_branch
          %254 = sbr.rel (%p252) target = $region40
        $region39: #{resonance_attention_forward.3} parent=31 // pred_region
          %256 = dma.done %s248, 512
        $region40: #{resonance_attention_forward.3} parent=31 // pred_fallthru
          _
        %s257 = sand.u32 %s18, 1
        %s258 = scalar_lea.sflag [#allocation6], %s257
        %s259 = sand.u32 %s112, 1
        %s260 = scalar_lea.vmem [#allocation7], %s259
        // Predicated region
        $region41: #{resonance_attention_forward.3} parent=31 // pred_check
          %p261 = pneg %p125
        $region42: #{resonance_attention_forward.3} parent=31 // pred_check_branch
          %263 = sbr.rel (%p261) target = $region44
        $region43: #{resonance_attention_forward.3} parent=31 // pred_region
          %265 = dma.done %s258, 16
        $region44: #{resonance_attention_forward.3} parent=31 // pred_fallthru
          _
        %p266 = pneg %p67
        %p267 = pneg %p64
        %s268 = sand.u32 %s18, 1
        %s269 = scalar_lea.sflag [#allocation6], %s268
        %s270 = sand.u32 %s84, 1
        %s271 = smul.addr %s270, 32
        %s272 = scalar_lea.vmem [#allocation5], %s271
        %p273 = pneg %p97
        %p274 = pneg %p94
        %s275 = sand.u32 %s18, 1
        %s276 = scalar_lea.sflag [#allocation6], %s275
        %s277 = sand.u32 %s112, 1
        %s278 = scalar_lea.vmem [#allocation7], %s277
        %p279 = pneg %p125
        %p280 = pneg %p122
        %p281 = pneg %p155
        %p282 = pneg %p152
        %s283 = smul.u32 2, %s24
        %p284 = scmp.lt.s32.totalorder %s25, 2
        %s285 = scalar_select %p284, %s25, 2
        %p286 = scmp.lt.s32.totalorder %s283, 1
        %s287 = scalar_select %p286, %s283, 1
        %p288 = scmp.lt.s32.totalorder %s26, 0
        %s289 = scalar_select %p288, %s26, 0
        %s290 = sadd.s32 %s289, %s287
        %s291 = smul.addr %s285, 2
        %s292 = sadd.s32 %s290, %s291
        %s293 = smul.addr %s292, 8
        %s294 = scalar_lea.vmem %s3, %s293
        %s295 = smul.u32 2, %s24
        %s296 = smul.u32 4, %s27
        %s297 = smul.u32 2, %s24
        %p298 = scmp.lt.s32.totalorder %s25, 2
        %s299 = scalar_select %p298, %s25, 2
        %p300 = scmp.lt.s32.totalorder %s297, 1
        %s301 = scalar_select %p300, %s297, 1
        %p302 = scmp.lt.s32.totalorder %s26, 0
        %s303 = scalar_select %p302, %s26, 0
        %s304 = sadd.s32 %s303, %s301
        %s305 = smul.addr %s299, 2
        %s306 = sadd.s32 %s304, %s305
        %s307 = smul.addr %s306, 8
        %s308 = scalar_lea.vmem %s3, %s307
        %s309 = smul.u32 2, %s24
        %p310 = scmp.eq.s32.totalorder %s27, 0
        // Predicated region
        $region45: #{resonance_attention_forward.3} parent=31 // pred_check
          %p311 = pneg %p310
        $region46: #{resonance_attention_forward.3} parent=31 // pred_check_branch
          %313 = sbr.rel (%p311) target = $region48
        $region47: #{resonance_attention_forward.3} parent=31 // pred_region
          %vm314 = vcmask 261120
          %315 = vst.msk [vmem:[#allocation2] sm:$0xff] %vm314, 0.0
          %316 = vst.msk [vmem:[#allocation2 + $0x8] sm:$0xff] %vm314, 0.0
        $region48: #{resonance_attention_forward.3} parent=31 // pred_fallthru
          _
        %v317 = vld [vmem:[#allocation2] sm:$0xff]
        %v318 = vld [vmem:[#allocation2 + $0x8] sm:$0xff]
        %v319 = vld [vmem:[#allocation3] sm:$0xff]
        %v320 = vld [vmem:[#allocation3 + $0x8] sm:$0xff]
        %v321 = vld [vmem:[%s251] sm:$0xff]
        %v322 = vld [vmem:[%s251 + $0x8] sm:$0xff]
        %v323 = vld [vmem:[%s251 + $0x10] sm:$0xff]
        %v324 = vld [vmem:[%s251 + $0x18] sm:$0xff]
        %vm325 = vcmask 261120
        %v327 = vsel %vm325, %v319, 0
        %v330 = vsel %vm325, %v320, 0
        %332 = vmatpush.msra.mxu0 0.0
        %333 = vmatpush.msra.mxu0 0.0
        %334 = vmatpush.msra.mxu0 0.0
        %335 = vmatpush.msra.mxu0 0.0
        %336 = vmatpush.msra.mxu0 0.0
        %337 = vmatpush.msra.mxu0 0.0
        %338 = vmatpush.msra.mxu0 0.0
        %339 = vmatpush.msra.mxu0 0.0
        %340 = vmatpush.msra.mxu0 0.0
        %341 = vmatpush.msra.mxu0 0.0
        %342 = vmatpush.msra.mxu0 0.0
        %343 = vmatpush.msra.mxu0 0.0
        %344 = vmatpush.msra.mxu0 %v324
        %345 = vmatpush.msra.mxu0 %v323
        %346 = vmatpush.msra.mxu0 %v322
        %347 = vmatpush.msra.mxu0 %v321
        %348 = vmatmul.f32.gmra.mxu0 %v327
        %v349 = vpop.f32.mrf.mxu0
        %v350 = vadd.f32 0.0, %v349
        %351 = vmatmul.f32.gmra.mxu0 %v330
        %v352 = vpop.f32.mrf.mxu0
        %v353 = vadd.f32 0.0, %v352
        %354 = vdwg.mxu0
        %v355 = vadd.f32 %v317, %v350
        %v356 = vadd.f32 %v318, %v353
        %357 = vst.msk [vmem:[#allocation2] sm:$0xff] %vm325, %v355
        %358 = vst.msk [vmem:[#allocation2 + $0x8] sm:$0xff] %vm325, %v356
        // Predicated region
        $region49: #{resonance_attention_forward.3} parent=31 // pred_check
          %p359 = pneg %p310
        $region50: #{resonance_attention_forward.3} parent=31 // pred_check_branch
          %361 = sbr.rel (%p359) target = $region52
        $region51: #{resonance_attention_forward.3} parent=31 // pred_region
          %v362 = vld [vmem:[#allocation2] sm:$0xff]
          %v363 = vld [vmem:[#allocation2 + $0x8] sm:$0xff]
          %v364 = vld [vmem:[%s260] sm:$0x1]
          %v366 = vperm.slane %v364, 0
          %v368 = vadd.f32 %v362, %v366
          %v369 = vadd.f32 %v363, %v366
          %370 = vst.msk [vmem:[%s308] sm:$0xff] %vm325, %v368
          %371 = vst.msk [vmem:[%s308 + $0x8] sm:$0xff] %vm325, %v369
        $region52: #{resonance_attention_forward.3} parent=31 // pred_fallthru
          _
        %s372 = smul.u32 2, %s24
        %p373 = scmp.lt.s32.totalorder %s25, 2
        %s374 = scalar_select %p373, %s25, 2
        %p375 = scmp.lt.s32.totalorder %s372, 1
        %s376 = scalar_select %p375, %s372, 1
        %p377 = scmp.lt.s32.totalorder %s26, 0
        %s378 = scalar_select %p377, %s26, 0
        %s379 = sadd.s32 %s378, %s376
        %s380 = smul.addr %s374, 2
        %s381 = sadd.s32 %s379, %s380
        %s382 = smul.addr %s381, 8
        %s383 = scalar_lea.vmem %s3, %s382
        // Predicated region
        $region53: #{resonance_attention_forward.3} parent=31 // pred_check
          %p384 = pneg %p152
        $region54: #{resonance_attention_forward.3} parent=31 // pred_check_branch
          %386 = sbr.rel (%p384) target = $region56
        $region55: #{resonance_attention_forward.3} parent=31 // pred_region
          %s387 = smul.u32 2, %s24
        $region56: #{resonance_attention_forward.3} parent=31 // pred_fallthru
          _
      $region32: #{resonance_attention_forward.3} parent=5 // pred_fallthru
        _
      %p388 = scmp.le.s32.totalorder 2, %s13
      // Predicated region
      $region57: #{resonance_attention_forward.3} parent=5 // pred_check
        %p389 = pneg %p388
      $region58: #{resonance_attention_forward.3} parent=5 // pred_check_branch
        %391 = sbr.rel (%p389) target = $region60
      $region59: #{resonance_attention_forward.3} parent=5 // pred_region
        %s392 = ssub.s32 %s13, 2
        // Predicated region
        $region61: #{resonance_attention_forward.3} parent=59 // pred_check
          %p393 = pneg %p158
        $region62: #{resonance_attention_forward.3} parent=59 // pred_check_branch
          %395 = sbr.rel (%p393) target = $region64
        $region63: #{resonance_attention_forward.3} parent=59 // pred_region
          %s396 = smul.u32 2, %s28
          %p397 = scmp.lt.s32.totalorder %s29, 2
          %s398 = scalar_select %p397, %s29, 2
          %p399 = scmp.lt.s32.totalorder %s396, 1
          %s400 = scalar_select %p399, %s396, 1
          %p401 = scmp.lt.s32.totalorder %s30, 0
          %s402 = scalar_select %p401, %s30, 0
          %s403 = sadd.s32 %s402, %s400
          %s404 = smul.addr %s398, 2
          %s405 = sadd.s32 %s403, %s404
          %s406 = smul.addr %s405, 8
          %s407 = scalar_lea.vmem %s3, %s406
        $region64: #{resonance_attention_forward.3} parent=59 // pred_fallthru
          _
      $region60: #{resonance_attention_forward.3} parent=5 // pred_fallthru
        _
    $region6: #{resonance_attention_forward.3} parent=1 // loop_footer
      %s17 = sadd.s32 1, %s13
    $region7: #{resonance_attention_forward.3} parent=1 // loop_footer_branch
      %12 = sbr.rel target = $region3
    $region8: #{resonance_attention_forward.3} parent=1 // loop_exit
      _
    %408 = vsyncpa [#allocation4], 1
    %s409 = scalar_lea.sflag [#allocation4], 1
    %410 = vsyncpa %s409, 1
    %411 = vsyncpa [#allocation6], 1
    %s412 = scalar_lea.sflag [#allocation6], 1
    %413 = vsyncpa %s412, 1

// kernel: resonance_attention_forward.4
$region0: #{resonance_attention_forward.4}
  #allocation0 [shape = 'u32[]', space=smem, size = 0x4, offset = 0x4, fixed_abs, tag = 'smem constant byte address 0x4 - core index']
  #allocation1 [shape = 'u32[72,128]{1,0:T(1,128)}', space=vmem, size = 0x9000, scoped, tag = 'internal scratch']
  #allocation2 [shape = 'f32[8,4]{1,0:T(8,128)}', space=vmem, size = 0x1000, scoped, tag = 'scratch operand']
  #allocation3 [shape = 'f32[8,4]{1,0:T(8,128)}', space=vmem, size = 0x1000, scoped, tag = 'scratch operand']
  #allocation4 [shape = 'f32[8,4]{1,0:T(8,128)}', space=vmem, size = 0x1000, scoped, tag = 'scratch operand']
  #allocation5 [shape = 'f32[8,32]{1,0:T(8,128)}', space=vmem, size = 0x1000, scoped, tag = 'scratch operand']
  %s0 = inlined_call_operand.vmem [shape: f32[3,2,8,32], index: 0, kind: input, shape index: {}, may-alias: {0,1,2}]
  %s1 = inlined_call_operand.vmem [shape: f32[3,2,8,32], index: 1, kind: input, shape index: {}, may-alias: {0,1,2}]
  %s2 = inlined_call_operand.vmem [shape: f32[3,2,8,32], index: 2, kind: input, shape index: {}, may-alias: {0,1,2}]
  %s3 = inlined_call_operand.vmem [shape: f32[2,8,32], index: 3, kind: output, shape index: {0}]
  %s4 = inlined_call_operand.vmem [shape: f32[2,1,8,128], index: 4, kind: output, shape index: {1}]
  %5 = xla_tuple %s3, %s4
  %s6 = sld [smem:[#allocation0]]
  $region61: #{resonance_attention_forward.4} parent=0
    _
  %s8 = ssub.s32 1, %s6
  %s9 = scalar_select 0, %s8, %s6
  loop: start=0, step=1, limit=4
  $region2: #{resonance_attention_forward.4} parent=0 // loop_pre_header
    _
  $region3: #{resonance_attention_forward.4} parent=0 // loop_header
    %s11 = sphi 0, %s15
    %p12 = scmp.ge.s32.totalorder %s11, 4
    %s18 = sphi 0, %s37
    %s19 = sphi 0, %s33
    %s20 = sphi 0, %s29
    %s21 = sphi 0, %s18
    %s22 = sphi 0, %s19
    %s23 = sphi 0, %s20
    %s24 = sphi 0, %s21
    %s25 = sphi 0, %s22
    %s26 = sphi 0, %s23
    %s42 = sphi 0, %s44
    %s45 = sphi 0, %s42
    %s46 = sphi 0, %s45
    %s62 = sphi 0, %s46
    %s70 = sphi 0, %s72
    %s73 = sphi 0, %s70
    %s74 = sphi 0, %s73
    %s90 = sphi 0, %s74
    %s98 = sphi 0, %s100
    %s101 = sphi 0, %s98
    %s102 = sphi 0, %s101
    %s118 = sphi 0, %s102
    %s126 = sphi 0, %s128
    %s129 = sphi 0, %s126
    %s130 = sphi 0, %s129
    %s146 = sphi 0, %s130
    %s154 = sphi 0, %s156
    %s157 = sphi 0, %s154
    %s158 = sphi 0, %s157
    %s174 = sphi 0, %s158
  $region4: #{resonance_attention_forward.4} parent=0 // loop_header_branch
    %14 = sbr.rel (%p12) target = $region8
  $region5: #{resonance_attention_forward.4} parent=0 // loop_body
    %s16 = ssub.s32 %s11, 1
    %s17 = ssub.s32 %s11, 2
    %s27 = sadd.s32 1, %s20
    %p28 = scmp.ge.s32.totalorder %s27, 1
    %s29 = scalar_select %p28, 0, %s27
    %s30 = sadd.s32 1, %s19
    %s31 = scalar_select %p28, %s30, %s19
    %p32 = scmp.ge.s32.totalorder %s31, 1
    %s33 = scalar_select %p32, 0, %s31
    %s34 = sadd.s32 1, %s18
    %s35 = scalar_select %p32, %s34, %s18
    %p36 = scmp.ge.s32.totalorder %s35, 2
    %s37 = scalar_select %p36, 0, %s35
    %s38 = ssub.s32 %s18, %s37
    %s39 = ssub.s32 %s19, %s33
    %s40 = sor.u32 %s38, %s39
    %p41 = scmp.eq.s32.totalorder %s40, 0
    %s43 = sadd.s32 %s42, 1
    %s44 = scalar_select %p41, %s42, %s43
    %p47 = pneg %p41
    %p48 = scmp.eq.s32.totalorder %s11, 1
    %p49 = por %p47, %p48
    %p50 = scmp.ne.s32.totalorder %s42, %s45
    %p51 = scmp.eq.s32.totalorder %s11, 0
    %p52 = por %p50, %p51
    %p53 = scmp.ne.s32.totalorder %s42, %s45
    %p54 = scmp.eq.s32.totalorder %s16, 1
    %p55 = por %p53, %p54
    %p56 = scmp.ne.s32.totalorder %s45, %s46
    %p57 = scmp.eq.s32.totalorder %s16, 0
    %p58 = por %p56, %p57
    %p59 = scmp.ne.s32.totalorder %s45, %s46
    %p60 = scmp.eq.s32.totalorder %s17, 1
    %p61 = por %p59, %p60
    %p63 = scmp.ne.s32.totalorder %s46, %s62
    %p64 = scmp.eq.s32.totalorder %s17, 0
    %p65 = por %p63, %p64
    %s66 = ssub.s32 %s18, %s37
    %s67 = ssub.s32 %s20, %s29
    %s68 = sor.u32 %s66, %s67
    %p69 = scmp.eq.s32.totalorder %s68, 0
    %s71 = sadd.s32 %s70, 1
    %s72 = scalar_select %p69, %s70, %s71
    %p75 = pneg %p69
    %p76 = scmp.eq.s32.totalorder %s11, 1
    %p77 = por %p75, %p76
    %p78 = scmp.ne.s32.totalorder %s70, %s73
    %p79 = scmp.eq.s32.totalorder %s11, 0
    %p80 = por %p78, %p79
    %p81 = scmp.ne.s32.totalorder %s70, %s73
    %p82 = scmp.eq.s32.totalorder %s16, 1
    %p83 = por %p81, %p82
    %p84 = scmp.ne.s32.totalorder %s73, %s74
    %p85 = scmp.eq.s32.totalorder %s16, 0
    %p86 = por %p84, %p85
    %p87 = scmp.ne.s32.totalorder %s73, %s74
    %p88 = scmp.eq.s32.totalorder %s17, 1
    %p89 = por %p87, %p88
    %p91 = scmp.ne.s32.totalorder %s74, %s90
    %p92 = scmp.eq.s32.totalorder %s17, 0
    %p93 = por %p91, %p92
    %s94 = ssub.s32 %s18, %s37
    %s95 = ssub.s32 %s20, %s29
    %s96 = sor.u32 %s94, %s95
    %p97 = scmp.eq.s32.totalorder %s96, 0
    %s99 = sadd.s32 %s98, 1
    %s100 = scalar_select %p97, %s98, %s99
    %p103 = pneg %p97
    %p104 = scmp.eq.s32.totalorder %s11, 1
    %p105 = por %p103, %p104
    %p106 = scmp.ne.s32.totalorder %s98, %s101
    %p107 = scmp.eq.s32.totalorder %s11, 0
    %p108 = por %p106, %p107
    %p109 = scmp.ne.s32.totalorder %s98, %s101
    %p110 = scmp.eq.s32.totalorder %s16, 1
    %p111 = por %p109, %p110
    %p112 = scmp.ne.s32.totalorder %s101, %s102
    %p113 = scmp.eq.s32.totalorder %s16, 0
    %p114 = por %p112, %p113
    %p115 = scmp.ne.s32.totalorder %s101, %s102
    %p116 = scmp.eq.s32.totalorder %s17, 1
    %p117 = por %p115, %p116
    %p119 = scmp.ne.s32.totalorder %s102, %s118
    %p120 = scmp.eq.s32.totalorder %s17, 0
    %p121 = por %p119, %p120
    %s122 = ssub.s32 %s18, %s37
    %s123 = ssub.s32 %s19, %s33
    %s124 = sor.u32 %s122, %s123
    %p125 = scmp.eq.s32.totalorder %s124, 0
    %s127 = sadd.s32 %s126, 1
    %s128 = scalar_select %p125, %s126, %s127
    %p131 = pneg %p125
    %p132 = scmp.eq.s32.totalorder %s11, 1
    %p133 = por %p131, %p132
    %p134 = scmp.ne.s32.totalorder %s126, %s129
    %p135 = scmp.eq.s32.totalorder %s11, 0
    %p136 = por %p134, %p135
    %p137 = scmp.ne.s32.totalorder %s126, %s129
    %p138 = scmp.eq.s32.totalorder %s16, 1
    %p139 = por %p137, %p138
    %p140 = scmp.ne.s32.totalorder %s129, %s130
    %p141 = scmp.eq.s32.totalorder %s16, 0
    %p142 = por %p140, %p141
    %p143 = scmp.ne.s32.totalorder %s129, %s130
    %p144 = scmp.eq.s32.totalorder %s17, 1
    %p145 = por %p143, %p144
    %p147 = scmp.ne.s32.totalorder %s130, %s146
    %p148 = scmp.eq.s32.totalorder %s17, 0
    %p149 = por %p147, %p148
    %s150 = ssub.s32 %s18, %s37
    %s151 = ssub.s32 %s19, %s33
    %s152 = sor.u32 %s150, %s151
    %p153 = scmp.eq.s32.totalorder %s152, 0
    %s155 = sadd.s32 %s154, 1
    %s156 = scalar_select %p153, %s154, %s155
    %p159 = pneg %p153
    %p160 = scmp.eq.s32.totalorder %s11, 1
    %p161 = por %p159, %p160
    %p162 = scmp.ne.s32.totalorder %s154, %s157
    %p163 = scmp.eq.s32.totalorder %s11, 0
    %p164 = por %p162, %p163
    %p165 = scmp.ne.s32.totalorder %s154, %s157
    %p166 = scmp.eq.s32.totalorder %s16, 1
    %p167 = por %p165, %p166
    %p168 = scmp.ne.s32.totalorder %s157, %s158
    %p169 = scmp.eq.s32.totalorder %s16, 0
    %p170 = por %p168, %p169
    %p171 = scmp.ne.s32.totalorder %s157, %s158
    %p172 = scmp.eq.s32.totalorder %s17, 1
    %p173 = por %p171, %p172
    %p175 = scmp.ne.s32.totalorder %s158, %s174
    %p176 = scmp.eq.s32.totalorder %s17, 0
    %p177 = por %p175, %p176
    %p178 = scmp.le.s32.totalorder 1, %s11
    %p179 = scmp.lt.s32.totalorder %s11, 3
    %p180 = pnand %p178, %p179
    %p181 = pneg %p180
    // Predicated region
    $region9: #{resonance_attention_forward.4} parent=5 // pred_check
      _
    $region10: #{resonance_attention_forward.4} parent=5 // pred_check_branch
      %183 = sbr.rel (%p180) target = $region12
    $region11: #{resonance_attention_forward.4} parent=5 // pred_region
      %s184 = ssub.s32 %s11, 1
    $region12: #{resonance_attention_forward.4} parent=5 // pred_fallthru
      _
    %p185 = scmp.lt.s32.totalorder %s11, 2
    // Predicated region
    $region13: #{resonance_attention_forward.4} parent=5 // pred_check
      %p186 = pneg %p185
    $region14: #{resonance_attention_forward.4} parent=5 // pred_check_branch
      %188 = sbr.rel (%p186) target = $region16
    $region15: #{resonance_attention_forward.4} parent=5 // pred_region
      // Predicated region
      $region17: #{resonance_attention_forward.4} parent=15 // pred_check
        %p189 = pneg %p52
      $region18: #{resonance_attention_forward.4} parent=15 // pred_check_branch
        %191 = sbr.rel (%p189) target = $region20
      $region19: #{resonance_attention_forward.4} parent=15 // pred_region
        %p192 = scmp.lt.s32.totalorder %s18, 1
        %s193 = scalar_select %p192, %s18, 1
        %p194 = scmp.lt.s32.totalorder %s19, 0
        %s195 = scalar_select %p194, %s19, 0
        %s196 = sadd.s32 %s195, %s193
        %s197 = smul.addr %s196, 8
        %s198 = scalar_lea.vmem %s0, %s197
      $region20: #{resonance_attention_forward.4} parent=15 // pred_fallthru
        _
      // Predicated region
      $region21: #{resonance_attention_forward.4} parent=15 // pred_check
        %p199 = pneg %p80
      $region22: #{resonance_attention_forward.4} parent=15 // pred_check_branch
        %201 = sbr.rel (%p199) target = $region24
      $region23: #{resonance_attention_forward.4} parent=15 // pred_region
        %p202 = scmp.lt.s32.totalorder %s18, 1
        %s203 = scalar_select %p202, %s18, 1
        %p204 = scmp.lt.s32.totalorder %s20, 0
        %s205 = scalar_select %p204, %s20, 0
        %s206 = sadd.s32 %s205, %s203
        %s207 = sadd.s32 %s206, 2
        %s208 = smul.addr %s207, 8
        %s209 = scalar_lea.vmem %s1, %s208
      $region24: #{resonance_attention_forward.4} parent=15 // pred_fallthru
        _
      // Predicated region
      $region25: #{resonance_attention_forward.4} parent=15 // pred_check
        %p210 = pneg %p108
      $region26: #{resonance_attention_forward.4} parent=15 // pred_check_branch
        %212 = sbr.rel (%p210) target = $region28
      $region27: #{resonance_attention_forward.4} parent=15 // pred_region
        %p213 = scmp.lt.s32.totalorder %s18, 1
        %s214 = scalar_select %p213, %s18, 1
        %p215 = scmp.lt.s32.totalorder %s20, 0
        %s216 = scalar_select %p215, %s20, 0
        %s217 = sadd.s32 %s216, %s214
        %s218 = sadd.s32 %s217, 4
        %s219 = smul.addr %s218, 8
        %s220 = scalar_lea.vmem %s2, %s219
      $region28: #{resonance_attention_forward.4} parent=15 // pred_fallthru
        _
    $region16: #{resonance_attention_forward.4} parent=5 // pred_fallthru
      _
    %p221 = scmp.le.s32.totalorder 1, %s11
    %p222 = scmp.lt.s32.totalorder %s11, 3
    %p223 = pnand %p221, %p222
    %p224 = pneg %p223
    // Predicated region
    $region29: #{resonance_attention_forward.4} parent=5 // pred_check
      _
    $region30: #{resonance_attention_forward.4} parent=5 // pred_check_branch
      %226 = sbr.rel (%p223) target = $region32
    $region31: #{resonance_attention_forward.4} parent=5 // pred_region
      %s227 = ssub.s32 %s11, 1
      %p228 = scmp.lt.s32.totalorder %s21, 1
      %s229 = scalar_select %p228, %s21, 1
      %p230 = scmp.lt.s32.totalorder %s22, 0
      %s231 = scalar_select %p230, %s22, 0
      %s232 = sadd.s32 %s231, %s229
      %s233 = smul.addr %s232, 8
      %s234 = scalar_lea.vmem %s0, %s233
      %p235 = pneg %p58
      %p236 = pneg %p55
      %p237 = scmp.lt.s32.totalorder %s21, 1
      %s238 = scalar_select %p237, %s21, 1
      %p239 = scmp.lt.s32.totalorder %s23, 0
      %s240 = scalar_select %p239, %s23, 0
      %s241 = sadd.s32 %s240, %s238
      %s242 = sadd.s32 %s241, 2
      %s243 = smul.addr %s242, 8
      %s244 = scalar_lea.vmem %s1, %s243
      %p245 = pneg %p86
      %p246 = pneg %p83
      %p247 = scmp.lt.s32.totalorder %s21, 1
      %s248 = scalar_select %p247, %s21, 1
      %p249 = scmp.lt.s32.totalorder %s23, 0
      %s250 = scalar_select %p249, %s23, 0
      %s251 = sadd.s32 %s250, %s248
      %s252 = sadd.s32 %s251, 4
      %s253 = smul.addr %s252, 8
      %s254 = scalar_lea.vmem %s2, %s253
      %p255 = pneg %p114
      %p256 = pneg %p111
      %p257 = pneg %p142
      %p258 = pneg %p139
      %p259 = scmp.lt.s32.totalorder %s21, 1
      %s260 = scalar_select %p259, %s21, 1
      %p261 = scmp.lt.s32.totalorder %s22, 0
      %s262 = scalar_select %p261, %s22, 0
      %s263 = sadd.s32 %s262, %s260
      %s264 = smul.addr %s263, 8
      %s265 = scalar_lea.vmem %s3, %s264
      %p266 = pneg %p170
      %p267 = pneg %p167
      %p268 = scmp.lt.s32.totalorder %s21, 1
      %s269 = scalar_select %p268, %s21, 1
      %p270 = scmp.lt.s32.totalorder %s22, 0
      %s271 = scalar_select %p270, %s22, 0
      %s272 = sadd.s32 %s271, %s269
      %s273 = smul.addr %s272, 8
      %s274 = scalar_lea.vmem %s4, %s273
      %p275 = scmp.lt.s32.totalorder %s21, 1
      %s276 = scalar_select %p275, %s21, 1
      %p277 = scmp.lt.s32.totalorder %s22, 0
      %s278 = scalar_select %p277, %s22, 0
      %s279 = sadd.s32 %s278, %s276
      %s280 = smul.addr %s279, 8
      %s281 = scalar_lea.vmem %s0, %s280
      %p282 = scmp.lt.s32.totalorder %s21, 1
      %s283 = scalar_select %p282, %s21, 1
      %p284 = scmp.lt.s32.totalorder %s23, 0
      %s285 = scalar_select %p284, %s23, 0
      %s286 = sadd.s32 %s285, %s283
      %s287 = sadd.s32 %s286, 2
      %s288 = smul.addr %s287, 8
      %s289 = scalar_lea.vmem %s1, %s288
      %p290 = scmp.lt.s32.totalorder %s21, 1
      %s291 = scalar_select %p290, %s21, 1
      %p292 = scmp.lt.s32.totalorder %s23, 0
      %s293 = scalar_select %p292, %s23, 0
      %s294 = sadd.s32 %s293, %s291
      %s295 = sadd.s32 %s294, 4
      %s296 = smul.addr %s295, 8
      %s297 = scalar_lea.vmem %s2, %s296
      %p298 = scmp.lt.s32.totalorder %s21, 1
      %s299 = scalar_select %p298, %s21, 1
      %p300 = scmp.lt.s32.totalorder %s22, 0
      %s301 = scalar_select %p300, %s22, 0
      %s302 = sadd.s32 %s301, %s299
      %s303 = smul.addr %s302, 8
      %s304 = scalar_lea.vmem %s3, %s303
      %p305 = scmp.lt.s32.totalorder %s21, 1
      %s306 = scalar_select %p305, %s21, 1
      %p307 = scmp.lt.s32.totalorder %s22, 0
      %s308 = scalar_select %p307, %s22, 0
      %s309 = sadd.s32 %s308, %s306
      %s310 = smul.addr %s309, 8
      %s311 = scalar_lea.vmem %s4, %s310
      %p312 = scmp.eq.s32.totalorder %s23, 0
      // Predicated region
      $region33: #{resonance_attention_forward.4} parent=31 // pred_check
        %p313 = pneg %p312
      $region34: #{resonance_attention_forward.4} parent=31 // pred_check_branch
        %315 = sbr.rel (%p313) target = $region36
      $region35: #{resonance_attention_forward.4} parent=31 // pred_region
        %vm316 = vcmask 31744
        %317 = vst.msk [vmem:[#allocation2] sm:$0xff] %vm316, -inf
        %318 = vst.msk [vmem:[#allocation3] sm:$0xff] %vm316, 0.0
        %319 = vst.msk [vmem:[#allocation4] sm:$0xff] %vm316, 0.0
        %vm320 = vcmask 261120
        %321 = vst.msk [vmem:[#allocation5] sm:$0xff] %vm320, 0.0
      $region36: #{resonance_attention_forward.4} parent=31 // pred_fallthru
        _
      %v322 = vld [vmem:[%s281] sm:$0xff]
      %v323 = vld [vmem:[%s289] sm:$0xff]
      %v324 = vld [vmem:[%s297] sm:$0xff]
      %v325 = vld [vmem:[#allocation2] sm:$0xff]
      %v326 = vld [vmem:[#allocation3] sm:$0xff]
      %v327 = vld [vmem:[#allocation4] sm:$0xff]
      %v328 = vld [vmem:[#allocation5] sm:$0xff]
      %vm329 = vcmask 64512
      %v331 = vsel %vm329, %v322, 0
      %v334 = vsel %vm329, %v323, 0
      %336 = vmatpush.xpose.msra.mxu0 0.0
      %337 = vmatpush.xpose.msra.mxu0 0.0
      %338 = vmatpush.xpose.msra.mxu0 0.0
      %339 = vmatpush.xpose.msra.mxu0 0.0
      %340 = vmatpush.xpose.msra.mxu0 0.0
      %341 = vmatpush.xpose.msra.mxu0 0.0
      %342 = vmatpush.xpose.msra.mxu0 0.0
      %343 = vmatpush.xpose.msra.mxu0 0.0
      %344 = vmatpush.xpose.msra.mxu0 0.0
      %345 = vmatpush.xpose.msra.mxu0 0.0
      %346 = vmatpush.xpose.msra.mxu0 0.0
      %347 = vmatpush.xpose.msra.mxu0 0.0
      %348 = vmatpush.xpose.msra.mxu0 0.0
      %349 = vmatpush.xpose.msra.mxu0 0.0
      %350 = vmatpush.xpose.msra.mxu0 0.0
      %351 = vmatpush.xpose.msra.mxu0 %v334
      %352 = vmatmul.f32.gmra.mxu0 %v331
      %v353 = vpop.f32.mrf.mxu0
      %v354 = vadd.f32 0.0, %v353
      %355 = vdwg.mxu0
      %v356 = vsel %vm329, %v354, -inf
      %357 = vmax.xlane.f32.xlu0 %v356
      %v358 = vpop.xlane.xlu0 %357
      %v359 = vmax.f32 %v325, %v358
      %v360 = vsub.f32 %v325, %v359
      %v361 = vmul.f32 %v360, 1.442695
      %v362 = vpow.pop %v361
      %364 = vset.pattern.permute.xlu0 0
      %365 = vperm.xlu0 %364, %v359
      %v366 = vpop.permute.xlu0 %365
      %v368 = vsub.f32 %v354, %v366
      %v369 = vmul.f32 %v368, 1.442695
      %v370 = vpow.pop %v369
      %v371 = vmul.f32 %v362, %v326
      %v372 = vsel %vm329, %v370, 0.0
      %373 = vadd.xlane.f32.xlu0 %v372
      %v374 = vpop.xlane.xlu0 %373
      %v375 = vadd.f32 %v371, %v374
      %v376 = vmul.f32 %v362, %v327
      %v377 = vmul.f32 %v370, %v354
      %v378 = vsel %vm329, %v377, 0.0
      %379 = vadd.xlane.f32.xlu0 %v378
      %v380 = vpop.xlane.xlu0 %379
      %v381 = vadd.f32 %v376, %v380
      %v383 = vsel %vm329, %v370, 0
      %385 = vmatpush.msra.mxu0 0.0
      %386 = vmatpush.msra.mxu0 0.0
      %387 = vmatpush.msra.mxu0 0.0
      %388 = vmatpush.msra.mxu0 0.0
      %389 = vmatpush.msra.mxu0 0.0
      %390 = vmatpush.msra.mxu0 0.0
      %391 = vmatpush.msra.mxu0 0.0
      %392 = vmatpush.msra.mxu0 0.0
      %393 = vmatpush.msra.mxu0 0.0
      %394 = vmatpush.msra.mxu0 0.0
      %395 = vmatpush.msra.mxu0 0.0
      %396 = vmatpush.msra.mxu0 0.0
      %397 = vmatpush.msra.mxu0 0.0
      %398 = vmatpush.msra.mxu0 0.0
      %399 = vmatpush.msra.mxu0 0.0
      %400 = vmatpush.msra.mxu0 %v324
      %401 = vmatmul.f32.gmra.mxu0 %v383
      %v402 = vpop.f32.mrf.mxu0
      %v403 = vadd.f32 0.0, %v402
      %404 = vdwg.mxu0
      %406 = vset.pattern.permute.xlu0 0
      %407 = vperm.xlu0 %406, %v362
      %v408 = vpop.permute.xlu0 %407
      %410 = vrot.lane.b32.xlu0 %v322, 120
      %v411 = vpop.permute.xlu0 %410
      %412 = vrot.lane.b32.xlu0 %v323, 120
      %v413 = vpop.permute.xlu0 %412
      %v414 = vsel %vm329, %v411, 0
      %v416 = vsel %vm329, %v413, 0
      %418 = vmatpush.xpose.msra.mxu0 0.0
      %419 = vmatpush.xpose.msra.mxu0 0.0
      %420 = vmatpush.xpose.msra.mxu0 0.0
      %421 = vmatpush.xpose.msra.mxu0 0.0
      %422 = vmatpush.xpose.msra.mxu0 0.0
      %423 = vmatpush.xpose.msra.mxu0 0.0
      %424 = vmatpush.xpose.msra.mxu0 0.0
      %425 = vmatpush.xpose.msra.mxu0 0.0
      %426 = vmatpush.xpose.msra.mxu0 0.0
      %427 = vmatpush.xpose.msra.mxu0 0.0
      %428 = vmatpush.xpose.msra.mxu0 0.0
      %429 = vmatpush.xpose.msra.mxu0 0.0
      %430 = vmatpush.xpose.msra.mxu0 0.0
      %431 = vmatpush.xpose.msra.mxu0 0.0
      %432 = vmatpush.xpose.msra.mxu0 0.0
      %433 = vmatpush.xpose.msra.mxu0 %v416
      %434 = vmatmul.f32.gmra.mxu0 %v414
      %v435 = vpop.f32.mrf.mxu0
      %v436 = vadd.f32 0.0, %v435
      %437 = vdwg.mxu0
      %v438 = vsel %vm329, %v436, -inf
      %439 = vmax.xlane.f32.xlu0 %v438
      %v440 = vpop.xlane.xlu0 %439
      %v441 = vmax.f32 %v325, %v440
      %v442 = vsub.f32 %v325, %v441
      %v443 = vmul.f32 %v442, 1.442695
      %v444 = vpow.pop %v443
      %446 = vset.pattern.permute.xlu0 1
      %447 = vperm.xlu0 %446, %v441
      %v448 = vpop.permute.xlu0 %447
      %v450 = vsub.f32 %v436, %v448
      %v451 = vmul.f32 %v450, 1.442695
      %v452 = vpow.pop %v451
      %v453 = vmul.f32 %v444, %v326
      %v454 = vsel %vm329, %v452, 0.0
      %455 = vadd.xlane.f32.xlu0 %v454
      %v456 = vpop.xlane.xlu0 %455
      %v457 = vadd.f32 %v453, %v456
      %v458 = vmul.f32 %v444, %v327
      %v459 = vmul.f32 %v452, %v436
      %v460 = vsel %vm329, %v459, 0.0
      %461 = vadd.xlane.f32.xlu0 %v460
      %v462 = vpop.xlane.xlu0 %461
      %v463 = vadd.f32 %v458, %v462
      %465 = vrot.lane.b32.xlu0 %v324, 120
      %v466 = vpop.permute.xlu0 %465
      %v469 = vsel %vm329, %v452, 0
      %471 = vmatpush.msra.mxu0 0.0
      %472 = vmatpush.msra.mxu0 0.0
      %473 = vmatpush.msra.mxu0 0.0
      %474 = vmatpush.msra.mxu0 0.0
      %475 = vmatpush.msra.mxu0 0.0
      %476 = vmatpush.msra.mxu0 0.0
      %477 = vmatpush.msra.mxu0 0.0
      %478 = vmatpush.msra.mxu0 0.0
      %479 = vmatpush.msra.mxu0 0.0
      %480 = vmatpush.msra.mxu0 0.0
      %481 = vmatpush.msra.mxu0 0.0
      %482 = vmatpush.msra.mxu0 0.0
      %483 = vmatpush.msra.mxu0 0.0
      %484 = vmatpush.msra.mxu0 0.0
      %485 = vmatpush.msra.mxu0 0.0
      %486 = vmatpush.msra.mxu0 %v466
      %487 = vmatmul.f32.gmra.mxu0 %v469
      %v488 = vpop.f32.mrf.mxu0
      %v489 = vadd.f32 0.0, %v488
      %490 = vdwg.mxu0
      %492 = vset.pattern.permute.xlu0 1
      %493 = vperm.xlu0 %492, %v444
      %v494 = vpop.permute.xlu0 %493
      %496 = vrot.lane.b32.xlu0 %v322, 112
      %v497 = vpop.permute.xlu0 %496
      %498 = vrot.lane.b32.xlu0 %v323, 112
      %v499 = vpop.permute.xlu0 %498
      %v500 = vsel %vm329, %v497, 0
      %v502 = vsel %vm329, %v499, 0
      %504 = vmatpush.xpose.msra.mxu0 0.0
      %505 = vmatpush.xpose.msra.mxu0 0.0
      %506 = vmatpush.xpose.msra.mxu0 0.0
      %507 = vmatpush.xpose.msra.mxu0 0.0
      %508 = vmatpush.xpose.msra.mxu0 0.0
      %509 = vmatpush.xpose.msra.mxu0 0.0
      %510 = vmatpush.xpose.msra.mxu0 0.0
      %511 = vmatpush.xpose.msra.mxu0 0.0
      %512 = vmatpush.xpose.msra.mxu0 0.0
      %513 = vmatpush.xpose.msra.mxu0 0.0
      %514 = vmatpush.xpose.msra.mxu0 0.0
      %515 = vmatpush.xpose.msra.mxu0 0.0
      %516 = vmatpush.xpose.msra.mxu0 0.0
      %517 = vmatpush.xpose.msra.mxu0 0.0
      %518 = vmatpush.xpose.msra.mxu0 0.0
      %519 = vmatpush.xpose.msra.mxu0 %v502
      %520 = vmatmul.f32.gmra.mxu0 %v500
      %v521 = vpop.f32.mrf.mxu0
      %v522 = vadd.f32 0.0, %v521
      %523 = vdwg.mxu0
      %v524 = vsel %vm329, %v522, -inf
      %525 = vmax.xlane.f32.xlu0 %v524
      %v526 = vpop.xlane.xlu0 %525
      %v527 = vmax.f32 %v325, %v526
      %v528 = vsub.f32 %v325, %v527
      %v529 = vmul.f32 %v528, 1.442695
      %v530 = vpow.pop %v529
      %532 = vset.pattern.permute.xlu0 2
      %533 = vperm.xlu0 %532, %v527
      %v534 = vpop.permute.xlu0 %533
      %v536 = vsub.f32 %v522, %v534
      %v537 = vmul.f32 %v536, 1.442695
      %v538 = vpow.pop %v537
      %v539 = vmul.f32 %v530, %v326
      %v540 = vsel %vm329, %v538, 0.0
      %541 = vadd.xlane.f32.xlu0 %v540
      %v542 = vpop.xlane.xlu0 %541
      %v543 = vadd.f32 %v539, %v542
      %v544 = vmul.f32 %v530, %v327
      %v545 = vmul.f32 %v538, %v522
      %v546 = vsel %vm329, %v545, 0.0
      %547 = vadd.xlane.f32.xlu0 %v546
      %v548 = vpop.xlane.xlu0 %547
      %v549 = vadd.f32 %v544, %v548
      %550 = vrot.lane.b32.xlu0 %v324, 112
      %v551 = vpop.permute.xlu0 %550
      %v554 = vsel %vm329, %v538, 0
      %556 = vmatpush.msra.mxu0 0.0
      %557 = vmatpush.msra.mxu0 0.0
      %558 = vmatpush.msra.mxu0 0.0
      %559 = vmatpush.msra.mxu0 0.0
      %560 = vmatpush.msra.mxu0 0.0
      %561 = vmatpush.msra.mxu0 0.0
      %562 = vmatpush.msra.mxu0 0.0
      %563 = vmatpush.msra.mxu0 0.0
      %564 = vmatpush.msra.mxu0 0.0
      %565 = vmatpush.msra.mxu0 0.0
      %566 = vmatpush.msra.mxu0 0.0
      %567 = vmatpush.msra.mxu0 0.0
      %568 = vmatpush.msra.mxu0 0.0
      %569 = vmatpush.msra.mxu0 0.0
      %570 = vmatpush.msra.mxu0 0.0
      %571 = vmatpush.msra.mxu0 %v551
      %572 = vmatmul.f32.gmra.mxu0 %v554
      %v573 = vpop.f32.mrf.mxu0
      %v574 = vadd.f32 0.0, %v573
      %575 = vdwg.mxu0
      %577 = vset.pattern.permute.xlu0 2
      %578 = vperm.xlu0 %577, %v530
      %v579 = vpop.permute.xlu0 %578
      %581 = vrot.lane.b32.xlu0 %v322, 104
      %v582 = vpop.permute.xlu0 %581
      %583 = vrot.lane.b32.xlu0 %v323, 104
      %v584 = vpop.permute.xlu0 %583
      %v585 = vsel %vm329, %v582, 0
      %v587 = vsel %vm329, %v584, 0
      %589 = vmatpush.xpose.msra.mxu0 0.0
      %590 = vmatpush.xpose.msra.mxu0 0.0
      %591 = vmatpush.xpose.msra.mxu0 0.0
      %592 = vmatpush.xpose.msra.mxu0 0.0
      %593 = vmatpush.xpose.msra.mxu0 0.0
      %594 = vmatpush.xpose.msra.mxu0 0.0
      %595 = vmatpush.xpose.msra.mxu0 0.0
      %596 = vmatpush.xpose.msra.mxu0 0.0
      %597 = vmatpush.xpose.msra.mxu0 0.0
      %598 = vmatpush.xpose.msra.mxu0 0.0
      %599 = vmatpush.xpose.msra.mxu0 0.0
      %600 = vmatpush.xpose.msra.mxu0 0.0
      %601 = vmatpush.xpose.msra.mxu0 0.0
      %602 = vmatpush.xpose.msra.mxu0 0.0
      %603 = vmatpush.xpose.msra.mxu0 0.0
      %604 = vmatpush.xpose.msra.mxu0 %v587
      %605 = vmatmul.f32.gmra.mxu0 %v585
      %v606 = vpop.f32.mrf.mxu0
      %v607 = vadd.f32 0.0, %v606
      %608 = vdwg.mxu0
      %v609 = vsel %vm329, %v607, -inf
      %610 = vmax.xlane.f32.xlu0 %v609
      %v611 = vpop.xlane.xlu0 %610
      %v612 = vmax.f32 %v325, %v611
      %v613 = vsub.f32 %v325, %v612
      %v614 = vmul.f32 %v613, 1.442695
      %v615 = vpow.pop %v614
      %617 = vset.pattern.permute.xlu0 3
      %618 = vperm.xlu0 %617, %v612
      %v619 = vpop.permute.xlu0 %618
      %v621 = vsub.f32 %v607, %v619
      %v622 = vmul.f32 %v621, 1.442695
      %v623 = vpow.pop %v622
      %v624 = vmul.f32 %v615, %v326
      %v625 = vsel %vm329, %v623, 0.0
      %626 = vadd.xlane.f32.xlu0 %v625
      %v627 = vpop.xlane.xlu0 %626
      %v628 = vadd.f32 %v624, %v627
      %v629 = vmul.f32 %v615, %v327
      %v630 = vmul.f32 %v623, %v607
      %v631 = vsel %vm329, %v630, 0.0
      %632 = vadd.xlane.f32.xlu0 %v631
      %v633 = vpop.xlane.xlu0 %632
      %v634 = vadd.f32 %v629, %v633
      %635 = vrot.lane.b32.xlu0 %v324, 104
      %v636 = vpop.permute.xlu0 %635
      %v639 = vsel %vm329, %v623, 0
      %641 = vmatpush.msra.mxu0 0.0
      %642 = vmatpush.msra.mxu0 0.0
      %643 = vmatpush.msra.mxu0 0.0
      %644 = vmatpush.msra.mxu0 0.0
      %645 = vmatpush.msra.mxu0 0.0
      %646 = vmatpush.msra.mxu0 0.0
      %647 = vmatpush.msra.mxu0 0.0
      %648 = vmatpush.msra.mxu0 0.0
      %649 = vmatpush.msra.mxu0 0.0
      %650 = vmatpush.msra.mxu0 0.0
      %651 = vmatpush.msra.mxu0 0.0
      %652 = vmatpush.msra.mxu0 0.0
      %653 = vmatpush.msra.mxu0 0.0
      %654 = vmatpush.msra.mxu0 0.0
      %655 = vmatpush.msra.mxu0 0.0
      %656 = vmatpush.msra.mxu0 %v636
      %657 = vmatmul.f32.gmra.mxu0 %v639
      %v658 = vpop.f32.mrf.mxu0
      %v659 = vadd.f32 0.0, %v658
      %660 = vdwg.mxu0
      %662 = vset.pattern.permute.xlu0 3
      %663 = vperm.xlu0 %662, %v615
      %v664 = vpop.permute.xlu0 %663
      %vm666 = vcmask 7168
      %v667 = vsel %vm666, %v359, %v441
      %vm668 = vcmask 15360
      %v669 = vsel %vm668, %v667, %v527
      %vm670 = vcmask 23552
      %v671 = vsel %vm670, %v669, %v612
      %vm672 = vcmask 31744
      %673 = vst.msk [vmem:[#allocation2] sm:$0xff] %vm672, %v671
      %v674 = vsel %vm666, %v375, %v457
      %v675 = vsel %vm668, %v674, %v543
      %v676 = vsel %vm670, %v675, %v628
      %677 = vst.msk [vmem:[#allocation3] sm:$0xff] %vm672, %v676
      %v678 = vsel %vm666, %v381, %v463
      %v679 = vsel %vm668, %v678, %v549
      %v680 = vsel %vm670, %v679, %v634
      %681 = vst.msk [vmem:[#allocation4] sm:$0xff] %vm672, %v680
      %v682 = vsel %vm329, %v408, %v494
      %vm683 = vcmask 130048
      %v684 = vsel %vm683, %v682, %v579
      %vm685 = vcmask 195584
      %v686 = vsel %vm685, %v684, %v664
      %688 = vrot.lane.b32.xlu0 %v489, 8
      %v689 = vpop.permute.xlu0 %688
      %692 = vrot.lane.b32.xlu0 %v574, 16
      %v693 = vpop.permute.xlu0 %692
      %696 = vrot.lane.b32.xlu0 %v659, 24
      %v697 = vpop.permute.xlu0 %696
      %v699 = vsel %vm329, %v403, %v689
      %v700 = vsel %vm683, %v699, %v693
      %v701 = vsel %vm685, %v700, %v697
      %v702 = vmul.f32 %v686, %v328
      %v703 = vadd.f32 %v702, %v701
      %vm704 = vcmask 261120
      %705 = vst.msk [vmem:[#allocation5] sm:$0xff] %vm704, %v703
      // Predicated region
      $region37: #{resonance_attention_forward.4} parent=31 // pred_check
        %p706 = pneg %p312
      $region38: #{resonance_attention_forward.4} parent=31 // pred_check_branch
        %708 = sbr.rel (%p706) target = $region40
      $region39: #{resonance_attention_forward.4} parent=31 // pred_region
        %v709 = vld [vmem:[#allocation3] sm:$0xff]
        %v710 = vrcp.pop %v709
        %v711 = vmul.f32 %v709, %v710
        %v712 = vsub.f32 1.0, %v711
        %v713 = vmul.f32 %v710, %v712
        %v714 = vadd.f32 %v710, %v713
        %vm715 = vweird.f32 %v709
        %vm716 = vweird.f32 %v710
        %vm717 = vmor %vm715, %vm716
        %v718 = vsel %vm717, %v710, %v714
        %v719 = vand.u32 2147483647, %v709
        %vm720 = vcmp.eq.f32.partialorder %v719, 8.507059e+37
        %v721 = vand.u32 %v709, 2147483648
        %v722 = vor.u32 1.1754944e-38, %v721
        %v723 = vsel %vm720, %v722, %v718
        %v724 = vmul.f32 1.0, %v723
        %v725 = vld [vmem:[#allocation2] sm:$0xff]
        %v726 = vlog2.pop %v709
        %v727 = vmul.f32 %v726, 0.6931472
        %v728 = vadd.f32 %v725, %v727
        %v729 = vld [vmem:[#allocation4] sm:$0xff]
        %v730 = vmul.f32 %v729, %v724
        %v731 = vsub.f32 %v728, %v730
        %v732 = vsel %vm672, %v731, 0.0
        %733 = vadd.xlane.f32.xlu0 %v732
        %v734 = vpop.xlane.xlu0 %733
        %v735 = vrot.slane %v734, 4
        %v736 = vadd.f32 %v734, %v735
        %v737 = vrot.slane %v736, 2
        %v738 = vadd.f32 %v736, %v737
        %v739 = vrot.slane %v738, 1
        %v740 = vadd.f32 %v738, %v739
        %s741 = vtos %v740
        %v742 = vstv %s741
        %743 = vst [vmem:[%s311] sm:$0xff] %v742
        %745 = vset.pattern.permute.xlu0 0
        %746 = vperm.xlu0 %745, %v724
        %v747 = vpop.permute.xlu0 %746
        %749 = vset.pattern.permute.xlu0 1
        %750 = vperm.xlu0 %749, %v724
        %v751 = vpop.permute.xlu0 %750
        %753 = vset.pattern.permute.xlu0 2
        %754 = vperm.xlu0 %753, %v724
        %v755 = vpop.permute.xlu0 %754
        %757 = vset.pattern.permute.xlu0 3
        %758 = vperm.xlu0 %757, %v724
        %v759 = vpop.permute.xlu0 %758
        %v761 = vsel %vm329, %v747, %v751
        %v762 = vsel %vm683, %v761, %v755
        %v763 = vsel %vm685, %v762, %v759
        %v764 = vld [vmem:[#allocation5] sm:$0xff]
        %v765 = vmul.f32 %v764, %v763
        %766 = vst.msk [vmem:[%s304] sm:$0xff] %vm704, %v765
      $region40: #{resonance_attention_forward.4} parent=31 // pred_fallthru
        _
      %p767 = scmp.lt.s32.totalorder %s21, 1
      %s768 = scalar_select %p767, %s21, 1
      %p769 = scmp.lt.s32.totalorder %s22, 0
      %s770 = scalar_select %p769, %s22, 0
      %s771 = sadd.s32 %s770, %s768
      %s772 = smul.addr %s771, 8
      %s773 = scalar_lea.vmem %s3, %s772
      %p774 = scmp.lt.s32.totalorder %s21, 1
      %s775 = scalar_select %p774, %s21, 1
      %p776 = scmp.lt.s32.totalorder %s22, 0
      %s777 = scalar_select %p776, %s22, 0
      %s778 = sadd.s32 %s777, %s775
      %s779 = smul.addr %s778, 8
      %s780 = scalar_lea.vmem %s4, %s779
      // Predicated region
      $region41: #{resonance_attention_forward.4} parent=31 // pred_check
        %p781 = pneg %p139
      $region42: #{resonance_attention_forward.4} parent=31 // pred_check_branch
        %783 = sbr.rel (%p781) target = $region44
      $region43: #{resonance_attention_forward.4} parent=31 // pred_region
        _
      $region44: #{resonance_attention_forward.4} parent=31 // pred_fallthru
        _
      // Predicated region
      $region45: #{resonance_attention_forward.4} parent=31 // pred_check
        %p784 = pneg %p167
      $region46: #{resonance_attention_forward.4} parent=31 // pred_check_branch
        %786 = sbr.rel (%p784) target = $region48
      $region47: #{resonance_attention_forward.4} parent=31 // pred_region
        _
      $region48: #{resonance_attention_forward.4} parent=31 // pred_fallthru
        _
    $region32: #{resonance_attention_forward.4} parent=5 // pred_fallthru
      _
    %p787 = scmp.le.s32.totalorder 2, %s11
    // Predicated region
    $region49: #{resonance_attention_forward.4} parent=5 // pred_check
      %p788 = pneg %p787
    $region50: #{resonance_attention_forward.4} parent=5 // pred_check_branch
      %790 = sbr.rel (%p788) target = $region52
    $region51: #{resonance_attention_forward.4} parent=5 // pred_region
      %s791 = ssub.s32 %s11, 2
      // Predicated region
      $region53: #{resonance_attention_forward.4} parent=51 // pred_check
        %p792 = pneg %p145
      $region54: #{resonance_attention_forward.4} parent=51 // pred_check_branch
        %794 = sbr.rel (%p792) target = $region56
      $region55: #{resonance_attention_forward.4} parent=51 // pred_region
        %p795 = scmp.lt.s32.totalorder %s24, 1
        %s796 = scalar_select %p795, %s24, 1
        %p797 = scmp.lt.s32.totalorder %s25, 0
        %s798 = scalar_select %p797, %s25, 0
        %s799 = sadd.s32 %s798, %s796
        %s800 = smul.addr %s799, 8
        %s801 = scalar_lea.vmem %s3, %s800
      $region56: #{resonance_attention_forward.4} parent=51 // pred_fallthru
        _
      // Predicated region
      $region57: #{resonance_attention_forward.4} parent=51 // pred_check
        %p802 = pneg %p173
      $region58: #{resonance_attention_forward.4} parent=51 // pred_check_branch
        %804 = sbr.rel (%p802) target = $region60
      $region59: #{resonance_attention_forward.4} parent=51 // pred_region
        %p805 = scmp.lt.s32.totalorder %s24, 1
        %s806 = scalar_select %p805, %s24, 1
        %p807 = scmp.lt.s32.totalorder %s25, 0
        %s808 = scalar_select %p807, %s25, 0
        %s809 = sadd.s32 %s808, %s806
        %s810 = smul.addr %s809, 8
        %s811 = scalar_lea.vmem %s4, %s810
      $region60: #{resonance_attention_forward.4} parent=51 // pred_fallthru
        _
    $region52: #{resonance_attention_forward.4} parent=5 // pred_fallthru
      _
  $region6: #{resonance_attention_forward.4} parent=0 // loop_footer
    %s15 = sadd.s32 1, %s11
  $region7: #{resonance_attention_forward.4} parent=0 // loop_footer_branch
    %10 = sbr.rel target = $region3
  $region8: #{resonance_attention_forward.4} parent=0 // loop_exit
    _

</llo_original>
